<compile_context>
chip_gen: v7x
topology: tpu7x:2x2x1
jax: 0.10.0
libtpu: 0.0.40
codegen_flags: <defaults>
</compile_context>

<pallas_src>
import jax
import jax.numpy as jnp
import numpy as np
from jax.experimental import pallas as pl
from jax.experimental.pallas import tpu as pltpu


# ----------------------------- Pallas kernel ------------------------------ #
def _lstm2_dense_kernel(x_ref,      # (T*Bp, F) time-major flattened input (row = t*Bp + b)
                        wih0_ref,   # (F, 4H)   layer0 input->gates  (= weight_ih_l0.T)
                        whh0_ref,   # (H, 4H)   layer0 hidden->gates (= weight_hh_l0.T)
                        b0_ref,     # (1, 4H)   layer0 combined bias (b_ih + b_hh)
                        w1s_ref,    # (2H, 4H)  layer1 stacked [W_ih1.T ; W_hh1.T]
                        b1_ref,     # (1, 4H)   layer1 combined bias
                        wd_ref,     # (T, H)    dense weight reshaped per-timestep
                        bd_ref,     # (1, 1)    dense bias (SMEM)
                        out_ref):   # (Bp, 1)
    T, H = wd_ref.shape
    B = x_ref.shape[0] // T
    G = 4 * H

    whh0 = whh0_ref[...]
    w1s = w1s_ref[...]
    wd = wd_ref[...]
    # Hoist the (1,4H)->(B,4H) broadcast out of the loop (JAX does not CSE broadcasts).
    b1b = jnp.broadcast_to(b1_ref[...], (B, G))

    # Layer-0 input projection for ALL timesteps in one MXU matmul, off the serial chain.
    xg = jnp.dot(x_ref[...], wih0_ref[...],
                 preferred_element_type=jnp.float32) + b0_ref[...]     # (T*B, 4H)

    # Full-width gate activation: tanh on the 'g' lanes, sigmoid elsewhere.
    # PyTorch gate order along the 4H axis is [i, f, g, o].
    lane = jax.lax.broadcasted_iota(jnp.int32, (B, G), 1)
    g_lane = (lane >= 2 * H) & (lane < 3 * H)

    def activate(gates):
        return jnp.where(g_lane, jnp.tanh(gates), jax.nn.sigmoid(gates))

    def cell_update(act, c_prev):
        i = act[:, 0 * H:1 * H]
        f = act[:, 1 * H:2 * H]
        g = act[:, 2 * H:3 * H]
        o = act[:, 3 * H:4 * H]
        c = f * c_prev + i * g
        h = o * jnp.tanh(c)
        return h, c

    zeros = jnp.zeros((B, H), jnp.float32)
    h1, c1, h2, c2 = zeros, zeros, zeros, zeros
    acc = zeros   # (B, H) elementwise dense accumulator; one lane-reduce after the loop

    for t in range(T):   # fully unrolled: T is static and small
        # layer 0: only the recurrent matmul remains inside the loop
        g0 = xg[t * B:(t + 1) * B, :] + jnp.dot(
            h1, whh0, preferred_element_type=jnp.float32)
        h1, c1 = cell_update(activate(g0), c1)
        # layer 1: single fused matmul over [h1 ; h2_prev]
        g1 = jnp.dot(jnp.concatenate([h1, h2], axis=-1), w1s,
                     preferred_element_type=jnp.float32) + b1b
        h2, c2 = cell_update(activate(g1), c2)
        # dense(flatten(outputs)) fused: elementwise accumulate (VPU only)
        acc = acc + h2 * wd[t:t + 1, :]

    out_ref[...] = jnp.sum(acc, axis=-1, keepdims=True) + bd_ref[0, 0]


# ------------------------------ wrapper ----------------------------------- #
@jax.jit
def vitalsign_spo2_forward(x, params):
    """x: (B, T, F) float32 -> (B, 1) float32."""
    B, T, F = x.shape
    Bp = ((B + 7) // 8) * 8                      # pad batch to a full sublane group

    x_pad = jnp.pad(x.astype(jnp.float32), ((0, Bp - B), (0, 0), (0, 0)))
    # time-major + flattened -> kernel's hoisted projection is one matmul and
    # per-step slabs are 8-sublane-aligned static slices (no in-kernel reshape).
    x_2d = jnp.transpose(x_pad, (1, 0, 2)).reshape(T * Bp, F)

    # Stack layer-1 input/hidden weights once -> one MXU push per step.
    w1s = jnp.concatenate([params["wih1"], params["whh1"]], axis=0)   # (2H, 4H)

    vmem = pl.BlockSpec(memory_space=pltpu.MemorySpace.VMEM)
    smem = pl.BlockSpec(memory_space=pltpu.MemorySpace.SMEM)
    out = pl.pallas_call(
        _lstm2_dense_kernel,
        out_shape=jax.ShapeDtypeStruct((Bp, 1), jnp.float32),
        in_specs=[vmem, vmem, vmem, vmem, vmem, vmem, vmem, smem],
        out_specs=vmem,
    )(x_2d,
      params["wih0"], params["whh0"], params["b0"],
      w1s, params["b1"], params["wd"], params["bd"])
    return out[:B]


# ----------------------- deterministic parameter init --------------------- #
def init_params(key, feature_size, hidden_size, seq_len):
    H = hidden_size
    scale = 1.0 / np.sqrt(H)
    ks = jax.random.split(key, 8)

    def u(k, shape):
        return jax.random.uniform(k, shape, minval=-scale, maxval=scale,
                                  dtype=jnp.float32)

    return {
        # layer 0 (input size = feature_size)
        "wih0": u(ks[0], (feature_size, 4 * H)),   # = weight_ih_l0.T
        "whh0": u(ks[1], (H, 4 * H)),              # = weight_hh_l0.T
        "b0":   u(ks[2], (1, 4 * H)),              # = bias_ih_l0 + bias_hh_l0 (combined)
        # layer 1 (input size = hidden_size)
        "wih1": u(ks[3], (H, 4 * H)),
        "whh1": u(ks[4], (H, 4 * H)),
        "b1":   u(ks[5], (1, 4 * H)),
        # dense: PyTorch weight (1, H*T) viewed as (T, H) per-timestep chunks
        "wd":   u(ks[6], (seq_len, H)),
        "bd":   u(ks[7], (1, 1)),
    }


# --------------------------- pure-JAX reference ---------------------------- #
def reference_forward(x, p):
    B, T, F = x.shape
    H = p["whh0"].shape[0]

    def cell(x_t, h, c, wih, whh, b):
        g = x_t @ wih + h @ whh + b
        i = jax.nn.sigmoid(g[:, :H])
        f = jax.nn.sigmoid(g[:, H:2 * H])
        gg = jnp.tanh(g[:, 2 * H:3 * H])
        o = jax.nn.sigmoid(g[:, 3 * H:])
        c = f * c + i * gg
        h = o * jnp.tanh(c)
        return h, c

    h1 = c1 = h2 = c2 = jnp.zeros((B, H), jnp.float32)
    outs = []
    for t in range(T):
        h1, c1 = cell(x[:, t], h1, c1, p["wih0"], p["whh0"], p["b0"])
        h2, c2 = cell(h1, h2, c2, p["wih1"], p["whh1"], p["b1"])
        outs.append(h2)
    outs = jnp.stack(outs, axis=1)                 # (B, T, H) == LSTM outputs
    flat = outs.reshape(B, T * H)                  # == outputs.reshape(-1, H*T)
    wd_flat = p["wd"].reshape(T * H)               # == dense.weight[0]
    return flat @ wd_flat[:, None] + p["bd"]       # (B, 1)


# ---------------------------------- main ----------------------------------- #
if __name__ == "__main__":
    # Small shapes consistent with the module (feature_size, hidden_size, seq_len)
    B, T, F, H = 2, 8, 8, 16

    key = jax.random.PRNGKey(0)
    k_x, k_p = jax.random.split(key)
    x = jax.random.normal(k_x, (B, T, F), dtype=jnp.float32)
    params = init_params(k_p, feature_size=F, hidden_size=H, seq_len=T)

    out = vitalsign_spo2_forward(x, params)
    out = jax.block_until_ready(out)

    ref = reference_forward(x, params)
    np.testing.assert_allclose(np.asarray(out), np.asarray(ref), rtol=1e-4, atol=1e-5)

    assert out.shape == (B, 1) and out.dtype == jnp.float32
    print("KERNEL_OK")
</pallas_src>

<mosaic_0001>
module attributes {stable_mosaic.version = 11 : i64} {
  func.func @_lstm2_dense_kernel(%arg0: memref<64x8xf32, #tpu.memory_space<vmem>>, %arg1: memref<8x64xf32, #tpu.memory_space<vmem>>, %arg2: memref<16x64xf32, #tpu.memory_space<vmem>>, %arg3: memref<1x64xf32, #tpu.memory_space<vmem>>, %arg4: memref<32x64xf32, #tpu.memory_space<vmem>>, %arg5: memref<1x64xf32, #tpu.memory_space<vmem>>, %arg6: memref<8x16xf32, #tpu.memory_space<vmem>>, %arg7: memref<1x1xf32, #tpu.memory_space<smem>>, %arg8: memref<8x1xf32, #tpu.memory_space<vmem>>) attributes {dimension_semantics = [], scalar_prefetch = 0 : i64, scratch_operands = 0 : i64, tpu.core_type = #tpu.core_type<tc>} {
    %c0 = arith.constant 0 : index
    %c0_0 = arith.constant 0 : index
    %0 = vector.load %arg2[%c0, %c0_0] : memref<16x64xf32, #tpu.memory_space<vmem>>, vector<16x64xf32>
    %c0_1 = arith.constant 0 : index
    %c0_2 = arith.constant 0 : index
    %1 = vector.load %arg4[%c0_1, %c0_2] : memref<32x64xf32, #tpu.memory_space<vmem>>, vector<32x64xf32>
    %c0_3 = arith.constant 0 : index
    %c0_4 = arith.constant 0 : index
    %2 = vector.load %arg6[%c0_3, %c0_4] : memref<8x16xf32, #tpu.memory_space<vmem>>, vector<8x16xf32>
    %c0_5 = arith.constant 0 : index
    %c0_6 = arith.constant 0 : index
    %3 = vector.load %arg5[%c0_5, %c0_6] : memref<1x64xf32, #tpu.memory_space<vmem>>, vector<1x64xf32>
    %4 = vector.shape_cast %3 : vector<1x64xf32> to vector<1x64xf32>
    %5 = vector.broadcast %4 : vector<1x64xf32> to vector<8x64xf32>
    %c0_7 = arith.constant 0 : index
    %c0_8 = arith.constant 0 : index
    %6 = vector.load %arg0[%c0_7, %c0_8] : memref<64x8xf32, #tpu.memory_space<vmem>>, vector<64x8xf32>
    %c0_9 = arith.constant 0 : index
    %c0_10 = arith.constant 0 : index
    %7 = vector.load %arg1[%c0_9, %c0_10] : memref<8x64xf32, #tpu.memory_space<vmem>>, vector<8x64xf32>
    %cst = arith.constant dense<0.000000e+00> : vector<64x64xf32>
    %8 = tpu.matmul %6, %7, %cst {dimension_numbers = #tpu.dot_dimension_numbers<[1], [0], [0], [1], [0, 0, 1, 1], [], []>} : vector<64x8xf32>, vector<8x64xf32>, vector<64x64xf32> -> vector<64x64xf32>
    %c0_11 = arith.constant 0 : index
    %c0_12 = arith.constant 0 : index
    %9 = vector.load %arg3[%c0_11, %c0_12] : memref<1x64xf32, #tpu.memory_space<vmem>>, vector<1x64xf32>
    %10 = vector.broadcast %9 : vector<1x64xf32> to vector<64x64xf32>
    %11 = arith.addf %8, %10 : vector<64x64xf32>
    %12 = tpu.iota {dimensions = array<i32: 1>} : vector<8x64xi32>
    %c32_i32 = arith.constant 32 : i32
    %13 = vector.broadcast %c32_i32 : i32 to vector<8x64xi32>
    %14 = arith.cmpi sge, %12, %13 : vector<8x64xi32>
    %c48_i32 = arith.constant 48 : i32
    %15 = vector.broadcast %c48_i32 : i32 to vector<8x64xi32>
    %16 = arith.cmpi slt, %12, %15 : vector<8x64xi32>
    %17 = arith.andi %14, %16 : vector<8x64xi1>
    %cst_13 = arith.constant 0.000000e+00 : f32
    %18 = vector.broadcast %cst_13 : f32 to vector<8x16xf32>
    %19 = vector.extract_strided_slice %11 {offsets = [0, 0], sizes = [8, 64], strides = [1, 1]} : vector<64x64xf32> to vector<8x64xf32>
    %cst_14 = arith.constant dense<0.000000e+00> : vector<8x64xf32>
    %20 = tpu.matmul %18, %0, %cst_14 {dimension_numbers = #tpu.dot_dimension_numbers<[1], [0], [0], [1], [0, 0, 1, 1], [], []>} : vector<8x16xf32>, vector<16x64xf32>, vector<8x64xf32> -> vector<8x64xf32>
    %21 = arith.addf %19, %20 : vector<8x64xf32>
    %22 = math.tanh %21 : vector<8x64xf32>
    %23 = arith.negf %21 : vector<8x64xf32>
    %24 = math.exp %23 : vector<8x64xf32>
    %cst_15 = arith.constant 1.000000e+00 : f32
    %25 = vector.broadcast %cst_15 : f32 to vector<8x64xf32>
    %26 = arith.addf %25, %24 : vector<8x64xf32>
    %27 = arith.divf %25, %26 : vector<8x64xf32>
    %28 = arith.select %17, %22, %27 : vector<8x64xi1>, vector<8x64xf32>
    %29 = vector.extract_strided_slice %28 {offsets = [0, 0], sizes = [8, 16], strides = [1, 1]} : vector<8x64xf32> to vector<8x16xf32>
    %30 = vector.extract_strided_slice %28 {offsets = [0, 16], sizes = [8, 16], strides = [1, 1]} : vector<8x64xf32> to vector<8x16xf32>
    %31 = vector.extract_strided_slice %28 {offsets = [0, 32], sizes = [8, 16], strides = [1, 1]} : vector<8x64xf32> to vector<8x16xf32>
    %32 = vector.extract_strided_slice %28 {offsets = [0, 48], sizes = [8, 16], strides = [1, 1]} : vector<8x64xf32> to vector<8x16xf32>
    %33 = arith.mulf %30, %18 : vector<8x16xf32>
    %34 = arith.mulf %29, %31 : vector<8x16xf32>
    %35 = arith.addf %33, %34 : vector<8x16xf32>
    %36 = math.tanh %35 : vector<8x16xf32>
    %37 = arith.mulf %32, %36 : vector<8x16xf32>
    %38 = tpu.concatenate %37, %18 in 1 : vector<8x16xf32>, vector<8x16xf32> -> vector<8x32xf32>
    %cst_16 = arith.constant dense<0.000000e+00> : vector<8x64xf32>
    %39 = tpu.matmul %38, %1, %cst_16 {dimension_numbers = #tpu.dot_dimension_numbers<[1], [0], [0], [1], [0, 0, 1, 1], [], []>} : vector<8x32xf32>, vector<32x64xf32>, vector<8x64xf32> -> vector<8x64xf32>
    %40 = arith.addf %39, %5 : vector<8x64xf32>
    %41 = math.tanh %40 : vector<8x64xf32>
    %42 = arith.negf %40 : vector<8x64xf32>
    %43 = math.exp %42 : vector<8x64xf32>
    %cst_17 = arith.constant 1.000000e+00 : f32
    %44 = vector.broadcast %cst_17 : f32 to vector<8x64xf32>
    %45 = arith.addf %44, %43 : vector<8x64xf32>
    %46 = arith.divf %44, %45 : vector<8x64xf32>
    %47 = arith.select %17, %41, %46 : vector<8x64xi1>, vector<8x64xf32>
    %48 = vector.extract_strided_slice %47 {offsets = [0, 0], sizes = [8, 16], strides = [1, 1]} : vector<8x64xf32> to vector<8x16xf32>
    %49 = vector.extract_strided_slice %47 {offsets = [0, 16], sizes = [8, 16], strides = [1, 1]} : vector<8x64xf32> to vector<8x16xf32>
    %50 = vector.extract_strided_slice %47 {offsets = [0, 32], sizes = [8, 16], strides = [1, 1]} : vector<8x64xf32> to vector<8x16xf32>
    %51 = vector.extract_strided_slice %47 {offsets = [0, 48], sizes = [8, 16], strides = [1, 1]} : vector<8x64xf32> to vector<8x16xf32>
    %52 = arith.mulf %49, %18 : vector<8x16xf32>
    %53 = arith.mulf %48, %50 : vector<8x16xf32>
    %54 = arith.addf %52, %53 : vector<8x16xf32>
    %55 = math.tanh %54 : vector<8x16xf32>
    %56 = arith.mulf %51, %55 : vector<8x16xf32>
    %57 = vector.extract_strided_slice %2 {offsets = [0, 0], sizes = [1, 16], strides = [1, 1]} : vector<8x16xf32> to vector<1x16xf32>
    %58 = vector.broadcast %57 : vector<1x16xf32> to vector<8x16xf32>
    %59 = arith.mulf %56, %58 : vector<8x16xf32>
    %60 = arith.addf %18, %59 : vector<8x16xf32>
    %61 = vector.extract_strided_slice %11 {offsets = [8, 0], sizes = [8, 64], strides = [1, 1]} : vector<64x64xf32> to vector<8x64xf32>
    %cst_18 = arith.constant dense<0.000000e+00> : vector<8x64xf32>
    %62 = tpu.matmul %37, %0, %cst_18 {dimension_numbers = #tpu.dot_dimension_numbers<[1], [0], [0], [1], [0, 0, 1, 1], [], []>} : vector<8x16xf32>, vector<16x64xf32>, vector<8x64xf32> -> vector<8x64xf32>
    %63 = arith.addf %61, %62 : vector<8x64xf32>
    %64 = math.tanh %63 : vector<8x64xf32>
    %65 = arith.negf %63 : vector<8x64xf32>
    %66 = math.exp %65 : vector<8x64xf32>
    %cst_19 = arith.constant 1.000000e+00 : f32
    %67 = vector.broadcast %cst_19 : f32 to vector<8x64xf32>
    %68 = arith.addf %67, %66 : vector<8x64xf32>
    %69 = arith.divf %67, %68 : vector<8x64xf32>
    %70 = arith.select %17, %64, %69 : vector<8x64xi1>, vector<8x64xf32>
    %71 = vector.extract_strided_slice %70 {offsets = [0, 0], sizes = [8, 16], strides = [1, 1]} : vector<8x64xf32> to vector<8x16xf32>
    %72 = vector.extract_strided_slice %70 {offsets = [0, 16], sizes = [8, 16], strides = [1, 1]} : vector<8x64xf32> to vector<8x16xf32>
    %73 = vector.extract_strided_slice %70 {offsets = [0, 32], sizes = [8, 16], strides = [1, 1]} : vector<8x64xf32> to vector<8x16xf32>
    %74 = vector.extract_strided_slice %70 {offsets = [0, 48], sizes = [8, 16], strides = [1, 1]} : vector<8x64xf32> to vector<8x16xf32>
    %75 = arith.mulf %72, %35 : vector<8x16xf32>
    %76 = arith.mulf %71, %73 : vector<8x16xf32>
    %77 = arith.addf %75, %76 : vector<8x16xf32>
    %78 = math.tanh %77 : vector<8x16xf32>
    %79 = arith.mulf %74, %78 : vector<8x16xf32>
    %80 = tpu.concatenate %79, %56 in 1 : vector<8x16xf32>, vector<8x16xf32> -> vector<8x32xf32>
    %cst_20 = arith.constant dense<0.000000e+00> : vector<8x64xf32>
    %81 = tpu.matmul %80, %1, %cst_20 {dimension_numbers = #tpu.dot_dimension_numbers<[1], [0], [0], [1], [0, 0, 1, 1], [], []>} : vector<8x32xf32>, vector<32x64xf32>, vector<8x64xf32> -> vector<8x64xf32>
    %82 = arith.addf %81, %5 : vector<8x64xf32>
    %83 = math.tanh %82 : vector<8x64xf32>
    %84 = arith.negf %82 : vector<8x64xf32>
    %85 = math.exp %84 : vector<8x64xf32>
    %cst_21 = arith.constant 1.000000e+00 : f32
    %86 = vector.broadcast %cst_21 : f32 to vector<8x64xf32>
    %87 = arith.addf %86, %85 : vector<8x64xf32>
    %88 = arith.divf %86, %87 : vector<8x64xf32>
    %89 = arith.select %17, %83, %88 : vector<8x64xi1>, vector<8x64xf32>
    %90 = vector.extract_strided_slice %89 {offsets = [0, 0], sizes = [8, 16], strides = [1, 1]} : vector<8x64xf32> to vector<8x16xf32>
    %91 = vector.extract_strided_slice %89 {offsets = [0, 16], sizes = [8, 16], strides = [1, 1]} : vector<8x64xf32> to vector<8x16xf32>
    %92 = vector.extract_strided_slice %89 {offsets = [0, 32], sizes = [8, 16], strides = [1, 1]} : vector<8x64xf32> to vector<8x16xf32>
    %93 = vector.extract_strided_slice %89 {offsets = [0, 48], sizes = [8, 16], strides = [1, 1]} : vector<8x64xf32> to vector<8x16xf32>
    %94 = arith.mulf %91, %54 : vector<8x16xf32>
    %95 = arith.mulf %90, %92 : vector<8x16xf32>
    %96 = arith.addf %94, %95 : vector<8x16xf32>
    %97 = math.tanh %96 : vector<8x16xf32>
    %98 = arith.mulf %93, %97 : vector<8x16xf32>
    %99 = vector.extract_strided_slice %2 {offsets = [1, 0], sizes = [1, 16], strides = [1, 1]} : vector<8x16xf32> to vector<1x16xf32>
    %100 = vector.broadcast %99 : vector<1x16xf32> to vector<8x16xf32>
    %101 = arith.mulf %98, %100 : vector<8x16xf32>
    %102 = arith.addf %60, %101 : vector<8x16xf32>
    %103 = vector.extract_strided_slice %11 {offsets = [16, 0], sizes = [8, 64], strides = [1, 1]} : vector<64x64xf32> to vector<8x64xf32>
    %cst_22 = arith.constant dense<0.000000e+00> : vector<8x64xf32>
    %104 = tpu.matmul %79, %0, %cst_22 {dimension_numbers = #tpu.dot_dimension_numbers<[1], [0], [0], [1], [0, 0, 1, 1], [], []>} : vector<8x16xf32>, vector<16x64xf32>, vector<8x64xf32> -> vector<8x64xf32>
    %105 = arith.addf %103, %104 : vector<8x64xf32>
    %106 = math.tanh %105 : vector<8x64xf32>
    %107 = arith.negf %105 : vector<8x64xf32>
    %108 = math.exp %107 : vector<8x64xf32>
    %cst_23 = arith.constant 1.000000e+00 : f32
    %109 = vector.broadcast %cst_23 : f32 to vector<8x64xf32>
    %110 = arith.addf %109, %108 : vector<8x64xf32>
    %111 = arith.divf %109, %110 : vector<8x64xf32>
    %112 = arith.select %17, %106, %111 : vector<8x64xi1>, vector<8x64xf32>
    %113 = vector.extract_strided_slice %112 {offsets = [0, 0], sizes = [8, 16], strides = [1, 1]} : vector<8x64xf32> to vector<8x16xf32>
    %114 = vector.extract_strided_slice %112 {offsets = [0, 16], sizes = [8, 16], strides = [1, 1]} : vector<8x64xf32> to vector<8x16xf32>
    %115 = vector.extract_strided_slice %112 {offsets = [0, 32], sizes = [8, 16], strides = [1, 1]} : vector<8x64xf32> to vector<8x16xf32>
    %116 = vector.extract_strided_slice %112 {offsets = [0, 48], sizes = [8, 16], strides = [1, 1]} : vector<8x64xf32> to vector<8x16xf32>
    %117 = arith.mulf %114, %77 : vector<8x16xf32>
    %118 = arith.mulf %113, %115 : vector<8x16xf32>
    %119 = arith.addf %117, %118 : vector<8x16xf32>
    %120 = math.tanh %119 : vector<8x16xf32>
    %121 = arith.mulf %116, %120 : vector<8x16xf32>
    %122 = tpu.concatenate %121, %98 in 1 : vector<8x16xf32>, vector<8x16xf32> -> vector<8x32xf32>
    %cst_24 = arith.constant dense<0.000000e+00> : vector<8x64xf32>
    %123 = tpu.matmul %122, %1, %cst_24 {dimension_numbers = #tpu.dot_dimension_numbers<[1], [0], [0], [1], [0, 0, 1, 1], [], []>} : vector<8x32xf32>, vector<32x64xf32>, vector<8x64xf32> -> vector<8x64xf32>
    %124 = arith.addf %123, %5 : vector<8x64xf32>
    %125 = math.tanh %124 : vector<8x64xf32>
    %126 = arith.negf %124 : vector<8x64xf32>
    %127 = math.exp %126 : vector<8x64xf32>
    %cst_25 = arith.constant 1.000000e+00 : f32
    %128 = vector.broadcast %cst_25 : f32 to vector<8x64xf32>
    %129 = arith.addf %128, %127 : vector<8x64xf32>
    %130 = arith.divf %128, %129 : vector<8x64xf32>
    %131 = arith.select %17, %125, %130 : vector<8x64xi1>, vector<8x64xf32>
    %132 = vector.extract_strided_slice %131 {offsets = [0, 0], sizes = [8, 16], strides = [1, 1]} : vector<8x64xf32> to vector<8x16xf32>
    %133 = vector.extract_strided_slice %131 {offsets = [0, 16], sizes = [8, 16], strides = [1, 1]} : vector<8x64xf32> to vector<8x16xf32>
    %134 = vector.extract_strided_slice %131 {offsets = [0, 32], sizes = [8, 16], strides = [1, 1]} : vector<8x64xf32> to vector<8x16xf32>
    %135 = vector.extract_strided_slice %131 {offsets = [0, 48], sizes = [8, 16], strides = [1, 1]} : vector<8x64xf32> to vector<8x16xf32>
    %136 = arith.mulf %133, %96 : vector<8x16xf32>
    %137 = arith.mulf %132, %134 : vector<8x16xf32>
    %138 = arith.addf %136, %137 : vector<8x16xf32>
    %139 = math.tanh %138 : vector<8x16xf32>
    %140 = arith.mulf %135, %139 : vector<8x16xf32>
    %141 = vector.extract_strided_slice %2 {offsets = [2, 0], sizes = [1, 16], strides = [1, 1]} : vector<8x16xf32> to vector<1x16xf32>
    %142 = vector.broadcast %141 : vector<1x16xf32> to vector<8x16xf32>
    %143 = arith.mulf %140, %142 : vector<8x16xf32>
    %144 = arith.addf %102, %143 : vector<8x16xf32>
    %145 = vector.extract_strided_slice %11 {offsets = [24, 0], sizes = [8, 64], strides = [1, 1]} : vector<64x64xf32> to vector<8x64xf32>
    %cst_26 = arith.constant dense<0.000000e+00> : vector<8x64xf32>
    %146 = tpu.matmul %121, %0, %cst_26 {dimension_numbers = #tpu.dot_dimension_numbers<[1], [0], [0], [1], [0, 0, 1, 1], [], []>} : vector<8x16xf32>, vector<16x64xf32>, vector<8x64xf32> -> vector<8x64xf32>
    %147 = arith.addf %145, %146 : vector<8x64xf32>
    %148 = math.tanh %147 : vector<8x64xf32>
    %149 = arith.negf %147 : vector<8x64xf32>
    %150 = math.exp %149 : vector<8x64xf32>
    %cst_27 = arith.constant 1.000000e+00 : f32
    %151 = vector.broadcast %cst_27 : f32 to vector<8x64xf32>
    %152 = arith.addf %151, %150 : vector<8x64xf32>
    %153 = arith.divf %151, %152 : vector<8x64xf32>
    %154 = arith.select %17, %148, %153 : vector<8x64xi1>, vector<8x64xf32>
    %155 = vector.extract_strided_slice %154 {offsets = [0, 0], sizes = [8, 16], strides = [1, 1]} : vector<8x64xf32> to vector<8x16xf32>
    %156 = vector.extract_strided_slice %154 {offsets = [0, 16], sizes = [8, 16], strides = [1, 1]} : vector<8x64xf32> to vector<8x16xf32>
    %157 = vector.extract_strided_slice %154 {offsets = [0, 32], sizes = [8, 16], strides = [1, 1]} : vector<8x64xf32> to vector<8x16xf32>
    %158 = vector.extract_strided_slice %154 {offsets = [0, 48], sizes = [8, 16], strides = [1, 1]} : vector<8x64xf32> to vector<8x16xf32>
    %159 = arith.mulf %156, %119 : vector<8x16xf32>
    %160 = arith.mulf %155, %157 : vector<8x16xf32>
    %161 = arith.addf %159, %160 : vector<8x16xf32>
    %162 = math.tanh %161 : vector<8x16xf32>
    %163 = arith.mulf %158, %162 : vector<8x16xf32>
    %164 = tpu.concatenate %163, %140 in 1 : vector<8x16xf32>, vector<8x16xf32> -> vector<8x32xf32>
    %cst_28 = arith.constant dense<0.000000e+00> : vector<8x64xf32>
    %165 = tpu.matmul %164, %1, %cst_28 {dimension_numbers = #tpu.dot_dimension_numbers<[1], [0], [0], [1], [0, 0, 1, 1], [], []>} : vector<8x32xf32>, vector<32x64xf32>, vector<8x64xf32> -> vector<8x64xf32>
    %166 = arith.addf %165, %5 : vector<8x64xf32>
    %167 = math.tanh %166 : vector<8x64xf32>
    %168 = arith.negf %166 : vector<8x64xf32>
    %169 = math.exp %168 : vector<8x64xf32>
    %cst_29 = arith.constant 1.000000e+00 : f32
    %170 = vector.broadcast %cst_29 : f32 to vector<8x64xf32>
    %171 = arith.addf %170, %169 : vector<8x64xf32>
    %172 = arith.divf %170, %171 : vector<8x64xf32>
    %173 = arith.select %17, %167, %172 : vector<8x64xi1>, vector<8x64xf32>
    %174 = vector.extract_strided_slice %173 {offsets = [0, 0], sizes = [8, 16], strides = [1, 1]} : vector<8x64xf32> to vector<8x16xf32>
    %175 = vector.extract_strided_slice %173 {offsets = [0, 16], sizes = [8, 16], strides = [1, 1]} : vector<8x64xf32> to vector<8x16xf32>
    %176 = vector.extract_strided_slice %173 {offsets = [0, 32], sizes = [8, 16], strides = [1, 1]} : vector<8x64xf32> to vector<8x16xf32>
    %177 = vector.extract_strided_slice %173 {offsets = [0, 48], sizes = [8, 16], strides = [1, 1]} : vector<8x64xf32> to vector<8x16xf32>
    %178 = arith.mulf %175, %138 : vector<8x16xf32>
    %179 = arith.mulf %174, %176 : vector<8x16xf32>
    %180 = arith.addf %178, %179 : vector<8x16xf32>
    %181 = math.tanh %180 : vector<8x16xf32>
    %182 = arith.mulf %177, %181 : vector<8x16xf32>
    %183 = vector.extract_strided_slice %2 {offsets = [3, 0], sizes = [1, 16], strides = [1, 1]} : vector<8x16xf32> to vector<1x16xf32>
    %184 = vector.broadcast %183 : vector<1x16xf32> to vector<8x16xf32>
    %185 = arith.mulf %182, %184 : vector<8x16xf32>
    %186 = arith.addf %144, %185 : vector<8x16xf32>
    %187 = vector.extract_strided_slice %11 {offsets = [32, 0], sizes = [8, 64], strides = [1, 1]} : vector<64x64xf32> to vector<8x64xf32>
    %cst_30 = arith.constant dense<0.000000e+00> : vector<8x64xf32>
    %188 = tpu.matmul %163, %0, %cst_30 {dimension_numbers = #tpu.dot_dimension_numbers<[1], [0], [0], [1], [0, 0, 1, 1], [], []>} : vector<8x16xf32>, vector<16x64xf32>, vector<8x64xf32> -> vector<8x64xf32>
    %189 = arith.addf %187, %188 : vector<8x64xf32>
    %190 = math.tanh %189 : vector<8x64xf32>
    %191 = arith.negf %189 : vector<8x64xf32>
    %192 = math.exp %191 : vector<8x64xf32>
    %cst_31 = arith.constant 1.000000e+00 : f32
    %193 = vector.broadcast %cst_31 : f32 to vector<8x64xf32>
    %194 = arith.addf %193, %192 : vector<8x64xf32>
    %195 = arith.divf %193, %194 : vector<8x64xf32>
    %196 = arith.select %17, %190, %195 : vector<8x64xi1>, vector<8x64xf32>
    %197 = vector.extract_strided_slice %196 {offsets = [0, 0], sizes = [8, 16], strides = [1, 1]} : vector<8x64xf32> to vector<8x16xf32>
    %198 = vector.extract_strided_slice %196 {offsets = [0, 16], sizes = [8, 16], strides = [1, 1]} : vector<8x64xf32> to vector<8x16xf32>
    %199 = vector.extract_strided_slice %196 {offsets = [0, 32], sizes = [8, 16], strides = [1, 1]} : vector<8x64xf32> to vector<8x16xf32>
    %200 = vector.extract_strided_slice %196 {offsets = [0, 48], sizes = [8, 16], strides = [1, 1]} : vector<8x64xf32> to vector<8x16xf32>
    %201 = arith.mulf %198, %161 : vector<8x16xf32>
    %202 = arith.mulf %197, %199 : vector<8x16xf32>
    %203 = arith.addf %201, %202 : vector<8x16xf32>
    %204 = math.tanh %203 : vector<8x16xf32>
    %205 = arith.mulf %200, %204 : vector<8x16xf32>
    %206 = tpu.concatenate %205, %182 in 1 : vector<8x16xf32>, vector<8x16xf32> -> vector<8x32xf32>
    %cst_32 = arith.constant dense<0.000000e+00> : vector<8x64xf32>
    %207 = tpu.matmul %206, %1, %cst_32 {dimension_numbers = #tpu.dot_dimension_numbers<[1], [0], [0], [1], [0, 0, 1, 1], [], []>} : vector<8x32xf32>, vector<32x64xf32>, vector<8x64xf32> -> vector<8x64xf32>
    %208 = arith.addf %207, %5 : vector<8x64xf32>
    %209 = math.tanh %208 : vector<8x64xf32>
    %210 = arith.negf %208 : vector<8x64xf32>
    %211 = math.exp %210 : vector<8x64xf32>
    %cst_33 = arith.constant 1.000000e+00 : f32
    %212 = vector.broadcast %cst_33 : f32 to vector<8x64xf32>
    %213 = arith.addf %212, %211 : vector<8x64xf32>
    %214 = arith.divf %212, %213 : vector<8x64xf32>
    %215 = arith.select %17, %209, %214 : vector<8x64xi1>, vector<8x64xf32>
    %216 = vector.extract_strided_slice %215 {offsets = [0, 0], sizes = [8, 16], strides = [1, 1]} : vector<8x64xf32> to vector<8x16xf32>
    %217 = vector.extract_strided_slice %215 {offsets = [0, 16], sizes = [8, 16], strides = [1, 1]} : vector<8x64xf32> to vector<8x16xf32>
    %218 = vector.extract_strided_slice %215 {offsets = [0, 32], sizes = [8, 16], strides = [1, 1]} : vector<8x64xf32> to vector<8x16xf32>
    %219 = vector.extract_strided_slice %215 {offsets = [0, 48], sizes = [8, 16], strides = [1, 1]} : vector<8x64xf32> to vector<8x16xf32>
    %220 = arith.mulf %217, %180 : vector<8x16xf32>
    %221 = arith.mulf %216, %218 : vector<8x16xf32>
    %222 = arith.addf %220, %221 : vector<8x16xf32>
    %223 = math.tanh %222 : vector<8x16xf32>
    %224 = arith.mulf %219, %223 : vector<8x16xf32>
    %225 = vector.extract_strided_slice %2 {offsets = [4, 0], sizes = [1, 16], strides = [1, 1]} : vector<8x16xf32> to vector<1x16xf32>
    %226 = vector.broadcast %225 : vector<1x16xf32> to vector<8x16xf32>
    %227 = arith.mulf %224, %226 : vector<8x16xf32>
    %228 = arith.addf %186, %227 : vector<8x16xf32>
    %229 = vector.extract_strided_slice %11 {offsets = [40, 0], sizes = [8, 64], strides = [1, 1]} : vector<64x64xf32> to vector<8x64xf32>
    %cst_34 = arith.constant dense<0.000000e+00> : vector<8x64xf32>
    %230 = tpu.matmul %205, %0, %cst_34 {dimension_numbers = #tpu.dot_dimension_numbers<[1], [0], [0], [1], [0, 0, 1, 1], [], []>} : vector<8x16xf32>, vector<16x64xf32>, vector<8x64xf32> -> vector<8x64xf32>
    %231 = arith.addf %229, %230 : vector<8x64xf32>
    %232 = math.tanh %231 : vector<8x64xf32>
    %233 = arith.negf %231 : vector<8x64xf32>
    %234 = math.exp %233 : vector<8x64xf32>
    %cst_35 = arith.constant 1.000000e+00 : f32
    %235 = vector.broadcast %cst_35 : f32 to vector<8x64xf32>
    %236 = arith.addf %235, %234 : vector<8x64xf32>
    %237 = arith.divf %235, %236 : vector<8x64xf32>
    %238 = arith.select %17, %232, %237 : vector<8x64xi1>, vector<8x64xf32>
    %239 = vector.extract_strided_slice %238 {offsets = [0, 0], sizes = [8, 16], strides = [1, 1]} : vector<8x64xf32> to vector<8x16xf32>
    %240 = vector.extract_strided_slice %238 {offsets = [0, 16], sizes = [8, 16], strides = [1, 1]} : vector<8x64xf32> to vector<8x16xf32>
    %241 = vector.extract_strided_slice %238 {offsets = [0, 32], sizes = [8, 16], strides = [1, 1]} : vector<8x64xf32> to vector<8x16xf32>
    %242 = vector.extract_strided_slice %238 {offsets = [0, 48], sizes = [8, 16], strides = [1, 1]} : vector<8x64xf32> to vector<8x16xf32>
    %243 = arith.mulf %240, %203 : vector<8x16xf32>
    %244 = arith.mulf %239, %241 : vector<8x16xf32>
    %245 = arith.addf %243, %244 : vector<8x16xf32>
    %246 = math.tanh %245 : vector<8x16xf32>
    %247 = arith.mulf %242, %246 : vector<8x16xf32>
    %248 = tpu.concatenate %247, %224 in 1 : vector<8x16xf32>, vector<8x16xf32> -> vector<8x32xf32>
    %cst_36 = arith.constant dense<0.000000e+00> : vector<8x64xf32>
    %249 = tpu.matmul %248, %1, %cst_36 {dimension_numbers = #tpu.dot_dimension_numbers<[1], [0], [0], [1], [0, 0, 1, 1], [], []>} : vector<8x32xf32>, vector<32x64xf32>, vector<8x64xf32> -> vector<8x64xf32>
    %250 = arith.addf %249, %5 : vector<8x64xf32>
    %251 = math.tanh %250 : vector<8x64xf32>
    %252 = arith.negf %250 : vector<8x64xf32>
    %253 = math.exp %252 : vector<8x64xf32>
    %cst_37 = arith.constant 1.000000e+00 : f32
    %254 = vector.broadcast %cst_37 : f32 to vector<8x64xf32>
    %255 = arith.addf %254, %253 : vector<8x64xf32>
    %256 = arith.divf %254, %255 : vector<8x64xf32>
    %257 = arith.select %17, %251, %256 : vector<8x64xi1>, vector<8x64xf32>
    %258 = vector.extract_strided_slice %257 {offsets = [0, 0], sizes = [8, 16], strides = [1, 1]} : vector<8x64xf32> to vector<8x16xf32>
    %259 = vector.extract_strided_slice %257 {offsets = [0, 16], sizes = [8, 16], strides = [1, 1]} : vector<8x64xf32> to vector<8x16xf32>
    %260 = vector.extract_strided_slice %257 {offsets = [0, 32], sizes = [8, 16], strides = [1, 1]} : vector<8x64xf32> to vector<8x16xf32>
    %261 = vector.extract_strided_slice %257 {offsets = [0, 48], sizes = [8, 16], strides = [1, 1]} : vector<8x64xf32> to vector<8x16xf32>
    %262 = arith.mulf %259, %222 : vector<8x16xf32>
    %263 = arith.mulf %258, %260 : vector<8x16xf32>
    %264 = arith.addf %262, %263 : vector<8x16xf32>
    %265 = math.tanh %264 : vector<8x16xf32>
    %266 = arith.mulf %261, %265 : vector<8x16xf32>
    %267 = vector.extract_strided_slice %2 {offsets = [5, 0], sizes = [1, 16], strides = [1, 1]} : vector<8x16xf32> to vector<1x16xf32>
    %268 = vector.broadcast %267 : vector<1x16xf32> to vector<8x16xf32>
    %269 = arith.mulf %266, %268 : vector<8x16xf32>
    %270 = arith.addf %228, %269 : vector<8x16xf32>
    %271 = vector.extract_strided_slice %11 {offsets = [48, 0], sizes = [8, 64], strides = [1, 1]} : vector<64x64xf32> to vector<8x64xf32>
    %cst_38 = arith.constant dense<0.000000e+00> : vector<8x64xf32>
    %272 = tpu.matmul %247, %0, %cst_38 {dimension_numbers = #tpu.dot_dimension_numbers<[1], [0], [0], [1], [0, 0, 1, 1], [], []>} : vector<8x16xf32>, vector<16x64xf32>, vector<8x64xf32> -> vector<8x64xf32>
    %273 = arith.addf %271, %272 : vector<8x64xf32>
    %274 = math.tanh %273 : vector<8x64xf32>
    %275 = arith.negf %273 : vector<8x64xf32>
    %276 = math.exp %275 : vector<8x64xf32>
    %cst_39 = arith.constant 1.000000e+00 : f32
    %277 = vector.broadcast %cst_39 : f32 to vector<8x64xf32>
    %278 = arith.addf %277, %276 : vector<8x64xf32>
    %279 = arith.divf %277, %278 : vector<8x64xf32>
    %280 = arith.select %17, %274, %279 : vector<8x64xi1>, vector<8x64xf32>
    %281 = vector.extract_strided_slice %280 {offsets = [0, 0], sizes = [8, 16], strides = [1, 1]} : vector<8x64xf32> to vector<8x16xf32>
    %282 = vector.extract_strided_slice %280 {offsets = [0, 16], sizes = [8, 16], strides = [1, 1]} : vector<8x64xf32> to vector<8x16xf32>
    %283 = vector.extract_strided_slice %280 {offsets = [0, 32], sizes = [8, 16], strides = [1, 1]} : vector<8x64xf32> to vector<8x16xf32>
    %284 = vector.extract_strided_slice %280 {offsets = [0, 48], sizes = [8, 16], strides = [1, 1]} : vector<8x64xf32> to vector<8x16xf32>
    %285 = arith.mulf %282, %245 : vector<8x16xf32>
    %286 = arith.mulf %281, %283 : vector<8x16xf32>
    %287 = arith.addf %285, %286 : vector<8x16xf32>
    %288 = math.tanh %287 : vector<8x16xf32>
    %289 = arith.mulf %284, %288 : vector<8x16xf32>
    %290 = tpu.concatenate %289, %266 in 1 : vector<8x16xf32>, vector<8x16xf32> -> vector<8x32xf32>
    %cst_40 = arith.constant dense<0.000000e+00> : vector<8x64xf32>
    %291 = tpu.matmul %290, %1, %cst_40 {dimension_numbers = #tpu.dot_dimension_numbers<[1], [0], [0], [1], [0, 0, 1, 1], [], []>} : vector<8x32xf32>, vector<32x64xf32>, vector<8x64xf32> -> vector<8x64xf32>
    %292 = arith.addf %291, %5 : vector<8x64xf32>
    %293 = math.tanh %292 : vector<8x64xf32>
    %294 = arith.negf %292 : vector<8x64xf32>
    %295 = math.exp %294 : vector<8x64xf32>
    %cst_41 = arith.constant 1.000000e+00 : f32
    %296 = vector.broadcast %cst_41 : f32 to vector<8x64xf32>
    %297 = arith.addf %296, %295 : vector<8x64xf32>
    %298 = arith.divf %296, %297 : vector<8x64xf32>
    %299 = arith.select %17, %293, %298 : vector<8x64xi1>, vector<8x64xf32>
    %300 = vector.extract_strided_slice %299 {offsets = [0, 0], sizes = [8, 16], strides = [1, 1]} : vector<8x64xf32> to vector<8x16xf32>
    %301 = vector.extract_strided_slice %299 {offsets = [0, 16], sizes = [8, 16], strides = [1, 1]} : vector<8x64xf32> to vector<8x16xf32>
    %302 = vector.extract_strided_slice %299 {offsets = [0, 32], sizes = [8, 16], strides = [1, 1]} : vector<8x64xf32> to vector<8x16xf32>
    %303 = vector.extract_strided_slice %299 {offsets = [0, 48], sizes = [8, 16], strides = [1, 1]} : vector<8x64xf32> to vector<8x16xf32>
    %304 = arith.mulf %301, %264 : vector<8x16xf32>
    %305 = arith.mulf %300, %302 : vector<8x16xf32>
    %306 = arith.addf %304, %305 : vector<8x16xf32>
    %307 = math.tanh %306 : vector<8x16xf32>
    %308 = arith.mulf %303, %307 : vector<8x16xf32>
    %309 = vector.extract_strided_slice %2 {offsets = [6, 0], sizes = [1, 16], strides = [1, 1]} : vector<8x16xf32> to vector<1x16xf32>
    %310 = vector.broadcast %309 : vector<1x16xf32> to vector<8x16xf32>
    %311 = arith.mulf %308, %310 : vector<8x16xf32>
    %312 = arith.addf %270, %311 : vector<8x16xf32>
    %313 = vector.extract_strided_slice %11 {offsets = [56, 0], sizes = [8, 64], strides = [1, 1]} : vector<64x64xf32> to vector<8x64xf32>
    %cst_42 = arith.constant dense<0.000000e+00> : vector<8x64xf32>
    %314 = tpu.matmul %289, %0, %cst_42 {dimension_numbers = #tpu.dot_dimension_numbers<[1], [0], [0], [1], [0, 0, 1, 1], [], []>} : vector<8x16xf32>, vector<16x64xf32>, vector<8x64xf32> -> vector<8x64xf32>
    %315 = arith.addf %313, %314 : vector<8x64xf32>
    %316 = math.tanh %315 : vector<8x64xf32>
    %317 = arith.negf %315 : vector<8x64xf32>
    %318 = math.exp %317 : vector<8x64xf32>
    %cst_43 = arith.constant 1.000000e+00 : f32
    %319 = vector.broadcast %cst_43 : f32 to vector<8x64xf32>
    %320 = arith.addf %319, %318 : vector<8x64xf32>
    %321 = arith.divf %319, %320 : vector<8x64xf32>
    %322 = arith.select %17, %316, %321 : vector<8x64xi1>, vector<8x64xf32>
    %323 = vector.extract_strided_slice %322 {offsets = [0, 0], sizes = [8, 16], strides = [1, 1]} : vector<8x64xf32> to vector<8x16xf32>
    %324 = vector.extract_strided_slice %322 {offsets = [0, 16], sizes = [8, 16], strides = [1, 1]} : vector<8x64xf32> to vector<8x16xf32>
    %325 = vector.extract_strided_slice %322 {offsets = [0, 32], sizes = [8, 16], strides = [1, 1]} : vector<8x64xf32> to vector<8x16xf32>
    %326 = vector.extract_strided_slice %322 {offsets = [0, 48], sizes = [8, 16], strides = [1, 1]} : vector<8x64xf32> to vector<8x16xf32>
    %327 = arith.mulf %324, %287 : vector<8x16xf32>
    %328 = arith.mulf %323, %325 : vector<8x16xf32>
    %329 = arith.addf %327, %328 : vector<8x16xf32>
    %330 = math.tanh %329 : vector<8x16xf32>
    %331 = arith.mulf %326, %330 : vector<8x16xf32>
    %332 = tpu.concatenate %331, %308 in 1 : vector<8x16xf32>, vector<8x16xf32> -> vector<8x32xf32>
    %cst_44 = arith.constant dense<0.000000e+00> : vector<8x64xf32>
    %333 = tpu.matmul %332, %1, %cst_44 {dimension_numbers = #tpu.dot_dimension_numbers<[1], [0], [0], [1], [0, 0, 1, 1], [], []>} : vector<8x32xf32>, vector<32x64xf32>, vector<8x64xf32> -> vector<8x64xf32>
    %334 = arith.addf %333, %5 : vector<8x64xf32>
    %335 = math.tanh %334 : vector<8x64xf32>
    %336 = arith.negf %334 : vector<8x64xf32>
    %337 = math.exp %336 : vector<8x64xf32>
    %cst_45 = arith.constant 1.000000e+00 : f32
    %338 = vector.broadcast %cst_45 : f32 to vector<8x64xf32>
    %339 = arith.addf %338, %337 : vector<8x64xf32>
    %340 = arith.divf %338, %339 : vector<8x64xf32>
    %341 = arith.select %17, %335, %340 : vector<8x64xi1>, vector<8x64xf32>
    %342 = vector.extract_strided_slice %341 {offsets = [0, 0], sizes = [8, 16], strides = [1, 1]} : vector<8x64xf32> to vector<8x16xf32>
    %343 = vector.extract_strided_slice %341 {offsets = [0, 16], sizes = [8, 16], strides = [1, 1]} : vector<8x64xf32> to vector<8x16xf32>
    %344 = vector.extract_strided_slice %341 {offsets = [0, 32], sizes = [8, 16], strides = [1, 1]} : vector<8x64xf32> to vector<8x16xf32>
    %345 = vector.extract_strided_slice %341 {offsets = [0, 48], sizes = [8, 16], strides = [1, 1]} : vector<8x64xf32> to vector<8x16xf32>
    %346 = arith.mulf %343, %306 : vector<8x16xf32>
    %347 = arith.mulf %342, %344 : vector<8x16xf32>
    %348 = arith.addf %346, %347 : vector<8x16xf32>
    %349 = math.tanh %348 : vector<8x16xf32>
    %350 = arith.mulf %345, %349 : vector<8x16xf32>
    %351 = vector.extract_strided_slice %2 {offsets = [7, 0], sizes = [1, 16], strides = [1, 1]} : vector<8x16xf32> to vector<1x16xf32>
    %352 = vector.broadcast %351 : vector<1x16xf32> to vector<8x16xf32>
    %353 = arith.mulf %350, %352 : vector<8x16xf32>
    %354 = arith.addf %312, %353 : vector<8x16xf32>
    %cst_46 = arith.constant dense<0.000000e+00> : vector<8xf32>
    %355 = vector.multi_reduction <add>, %354, %cst_46 [1] : vector<8x16xf32> to vector<8xf32>
    %356 = vector.shape_cast %355 : vector<8xf32> to vector<8x1xf32>
    %c0_47 = arith.constant 0 : index
    %c0_48 = arith.constant 0 : index
    %357 = memref.load %arg7[%c0_47, %c0_48] : memref<1x1xf32, #tpu.memory_space<smem>>
    %358 = vector.broadcast %357 : f32 to vector<8x1xf32>
    %359 = arith.addf %356, %358 : vector<8x1xf32>
    %c0_49 = arith.constant 0 : index
    %c0_50 = arith.constant 0 : index
    %360 = vector.load %arg8[%c0_49, %c0_50] : memref<8x1xf32, #tpu.memory_space<vmem>>, vector<8x1xf32>
    tpu.vector_store %arg8[%c0_49, %c0_50], %359 {strides = array<i32>} : memref<8x1xf32, #tpu.memory_space<vmem>>, vector<8x1xf32>,
    return
  }
}

</mosaic_0001>

<llo_original>
// kernel: vitalsign_spo2_forward.1
$region0: #{vitalsign_spo2_forward.1}
  #allocation0 [shape = 'u32[]', space=smem, size = 0x4, offset = 0x4, fixed_abs, tag = 'smem constant byte address 0x4 - core index']
  #allocation1 [shape = 'u32[144,128]{1,0:T(1,128)}', space=vmem, size = 0x12000, scoped, tag = 'internal scratch']
  #allocation2 [shape = 'f32[1,1]{1,0:T(1,128)S(6)}', space=smem, size = 0x200, scoped, tag = 'scoped memory for vitalsign_spo2_forward.1']
  %s0 = inlined_call_operand.vmem [shape: f32[64,8], index: 0, kind: input, shape index: {}]
  %s1 = inlined_call_operand.vmem [shape: f32[8,64], index: 1, kind: input, shape index: {}]
  %s2 = inlined_call_operand.vmem [shape: f32[16,64], index: 2, kind: input, shape index: {}]
  %s3 = inlined_call_operand.vmem [shape: f32[1,64], index: 3, kind: input, shape index: {}]
  %s4 = inlined_call_operand.vmem [shape: f32[32,64], index: 4, kind: input, shape index: {}]
  %s5 = inlined_call_operand.vmem [shape: f32[1,64], index: 5, kind: input, shape index: {}]
  %s6 = inlined_call_operand.vmem [shape: f32[8,16], index: 6, kind: input, shape index: {}]
  %s7 = inlined_call_operand.<no memory space> [shape: f32[1,1], index: 7, kind: input, shape index: {}]
  %s8 = inlined_call_operand.vmem [shape: f32[8,1], index: 8, kind: output, shape index: {}]
  %s9 = sld [smem:[#allocation0]]
  $region42: #{vitalsign_spo2_forward.1} parent=0
    _
  %s11 = ssub.s32 1, %s9
  %s12 = scalar_select 0, %s11, %s9
  %13 = sst [smem:[#allocation2]] %s7
  // Predicated region
  $region2: #{vitalsign_spo2_forward.1} parent=0 // pred_check
    _
  $region3: #{vitalsign_spo2_forward.1} parent=0 // pred_check_branch
    %15 = sbr.rel (0) target = $region5
  $region4: #{vitalsign_spo2_forward.1} parent=0 // pred_region
    _
  $region5: #{vitalsign_spo2_forward.1} parent=0 // pred_fallthru
    _
  // Predicated region
  $region6: #{vitalsign_spo2_forward.1} parent=0 // pred_check
    _
  $region7: #{vitalsign_spo2_forward.1} parent=0 // pred_check_branch
    %17 = sbr.rel (0) target = $region9
  $region8: #{vitalsign_spo2_forward.1} parent=0 // pred_region
    _
  $region9: #{vitalsign_spo2_forward.1} parent=0 // pred_fallthru
    _
  // Predicated region
  $region10: #{vitalsign_spo2_forward.1} parent=0 // pred_check
    _
  $region11: #{vitalsign_spo2_forward.1} parent=0 // pred_check_branch
    %19 = sbr.rel (0) target = $region13
  $region12: #{vitalsign_spo2_forward.1} parent=0 // pred_region
    _
  $region13: #{vitalsign_spo2_forward.1} parent=0 // pred_fallthru
    _
  // Predicated region
  $region14: #{vitalsign_spo2_forward.1} parent=0 // pred_check
    _
  $region15: #{vitalsign_spo2_forward.1} parent=0 // pred_check_branch
    %21 = sbr.rel (0) target = $region17
  $region16: #{vitalsign_spo2_forward.1} parent=0 // pred_region
    _
  $region17: #{vitalsign_spo2_forward.1} parent=0 // pred_fallthru
    _
  // Predicated region
  $region18: #{vitalsign_spo2_forward.1} parent=0 // pred_check
    _
  $region19: #{vitalsign_spo2_forward.1} parent=0 // pred_check_branch
    %23 = sbr.rel (0) target = $region21
  $region20: #{vitalsign_spo2_forward.1} parent=0 // pred_region
    _
  $region21: #{vitalsign_spo2_forward.1} parent=0 // pred_fallthru
    _
  // Predicated region
  $region22: #{vitalsign_spo2_forward.1} parent=0 // pred_check
    _
  $region23: #{vitalsign_spo2_forward.1} parent=0 // pred_check_branch
    %25 = sbr.rel (0) target = $region25
  $region24: #{vitalsign_spo2_forward.1} parent=0 // pred_region
    _
  $region25: #{vitalsign_spo2_forward.1} parent=0 // pred_fallthru
    _
  // Predicated region
  $region26: #{vitalsign_spo2_forward.1} parent=0 // pred_check
    _
  $region27: #{vitalsign_spo2_forward.1} parent=0 // pred_check_branch
    %27 = sbr.rel (0) target = $region29
  $region28: #{vitalsign_spo2_forward.1} parent=0 // pred_region
    _
  $region29: #{vitalsign_spo2_forward.1} parent=0 // pred_fallthru
    _
  // Predicated region
  $region30: #{vitalsign_spo2_forward.1} parent=0 // pred_check
    _
  $region31: #{vitalsign_spo2_forward.1} parent=0 // pred_check_branch
    %29 = sbr.rel (0) target = $region33
  $region32: #{vitalsign_spo2_forward.1} parent=0 // pred_region
    _
  $region33: #{vitalsign_spo2_forward.1} parent=0 // pred_fallthru
    _
  %v30 = vld [vmem:[%s2] sm:$0xff]
  %v31 = vld [vmem:[%s2 + $0x8] sm:$0xff]
  %v32 = vld [vmem:[%s4] sm:$0xff]
  %v33 = vld [vmem:[%s4 + $0x8] sm:$0xff]
  %v34 = vld [vmem:[%s4 + $0x10] sm:$0xff]
  %v35 = vld [vmem:[%s4 + $0x18] sm:$0xff]
  %v36 = vld [vmem:[%s6] sm:$0xff]
  %v37 = vld [vmem:[%s5] sm:$0x1]
  %v39 = vlaneseq
  %v40 = vshrl.u32 %v39, 7
  %v41 = vsub.s32 0, %v40
  %v42 = vrot.slane %v37, %v41
  %v44 = vld [vmem:[%s0] sm:$0xff]
  %v45 = vld [vmem:[%s0 + $0x8] sm:$0xff]
  %v46 = vld [vmem:[%s0 + $0x10] sm:$0xff]
  %v47 = vld [vmem:[%s0 + $0x18] sm:$0xff]
  %v48 = vld [vmem:[%s0 + $0x20] sm:$0xff]
  %v49 = vld [vmem:[%s0 + $0x28] sm:$0xff]
  %v50 = vld [vmem:[%s0 + $0x30] sm:$0xff]
  %v51 = vld [vmem:[%s0 + $0x38] sm:$0xff]
  %v52 = vld [vmem:[%s1] sm:$0xff]
  %v53 = vld [vmem:[%s3] sm:$0x1]
  %v55 = vlaneseq
  %v56 = vshrl.u32 %v55, 7
  %v57 = vsub.s32 0, %v56
  %v58 = vrot.slane %v53, %v57
  %vm60 = vcmask 64512
  %v62 = vsel %vm60, %v44, 0
  %v65 = vsel %vm60, %v45, 0
  %v68 = vsel %vm60, %v46, 0
  %v71 = vsel %vm60, %v47, 0
  %v74 = vsel %vm60, %v48, 0
  %v77 = vsel %vm60, %v49, 0
  %v80 = vsel %vm60, %v50, 0
  %v83 = vsel %vm60, %v51, 0
  %85 = vmatprep.subr.mxu0 0.0
  %86 = vmatpush1.msra.mxu0 %v52
  %87 = vmatprep.subr.mxu0 0.0
  %88 = vmatpush1.msra.mxu0 0.0
  %89 = vmatprep.subr.mxu0 0.0
  %90 = vmatpush1.msra.mxu0 0.0
  %91 = vmatprep.subr.mxu0 0.0
  %92 = vmatpush1.msra.mxu0 0.0
  %93 = vmatprep.subr.mxu0 0.0
  %94 = vmatpush1.msra.mxu0 0.0
  %95 = vmatprep.subr.mxu0 0.0
  %96 = vmatpush1.msra.mxu0 0.0
  %97 = vmatprep.subr.mxu0 0.0
  %98 = vmatpush1.msra.mxu0 0.0
  %99 = vmatprep.subr.mxu0 0.0
  %100 = vmatpush1.msra.mxu0 0.0
  %101 = vmatprep.subr.mxu0 0.0
  %102 = vmatpush1.msra.mxu0 0.0
  %103 = vmatprep.subr.mxu0 0.0
  %104 = vmatpush1.msra.mxu0 0.0
  %105 = vmatprep.subr.mxu0 0.0
  %106 = vmatpush1.msra.mxu0 0.0
  %107 = vmatprep.subr.mxu0 0.0
  %108 = vmatpush1.msra.mxu0 0.0
  %109 = vmatprep.subr.mxu0 0.0
  %110 = vmatpush1.msra.mxu0 0.0
  %111 = vmatprep.subr.mxu0 0.0
  %112 = vmatpush1.msra.mxu0 0.0
  %113 = vmatprep.subr.mxu0 0.0
  %114 = vmatpush1.msra.mxu0 0.0
  %115 = vmatprep.subr.mxu0 0.0
  %116 = vmatpush1.msra.mxu0 0.0
  %117 = vmatprep.subr.mxu0 0.0
  %118 = vmatpush1.msra.mxu0 0.0
  %119 = vmatprep.subr.mxu0 0.0
  %120 = vmatpush1.msra.mxu0 0.0
  %121 = vmatprep.subr.mxu0 0.0
  %122 = vmatpush1.msra.mxu0 0.0
  %123 = vmatprep.subr.mxu0 0.0
  %124 = vmatpush1.msra.mxu0 0.0
  %125 = vmatprep.subr.mxu0 0.0
  %126 = vmatpush1.msra.mxu0 0.0
  %127 = vmatprep.subr.mxu0 0.0
  %128 = vmatpush1.msra.mxu0 0.0
  %129 = vmatprep.subr.mxu0 0.0
  %130 = vmatpush1.msra.mxu0 0.0
  %131 = vmatprep.subr.mxu0 0.0
  %132 = vmatpush1.msra.mxu0 0.0
  %133 = vmatprep.subr.mxu0 0.0
  %134 = vmatpush1.msra.mxu0 0.0
  %135 = vmatprep.subr.mxu0 0.0
  %136 = vmatpush1.msra.mxu0 0.0
  %137 = vmatprep.subr.mxu0 0.0
  %138 = vmatpush1.msra.mxu0 0.0
  %139 = vmatprep.subr.mxu0 0.0
  %140 = vmatpush1.msra.mxu0 0.0
  %141 = vmatprep.subr.mxu0 0.0
  %142 = vmatpush1.msra.mxu0 0.0
  %143 = vmatprep.subr.mxu0 0.0
  %144 = vmatpush1.msra.mxu0 0.0
  %145 = vmatprep.subr.mxu0 0.0
  %146 = vmatpush1.msra.mxu0 0.0
  %147 = vmatprep.subr.mxu0 0.0
  %148 = vmatpush1.msra.mxu0 0.0
  %149 = vmatprep.mubr.f32.mxu0 0.0
  %150 = vmatmul.mubr.f32.gmra.mrb[0].mxu0 %v62
  %v151 = vpop.f32.mrb[0].mxu0
  %v152 = vadd.f32 %v58, %v151
  %v153 = vpop.f32.mrb[0].mxu0
  %154 = vmatprep.mubr.f32.mxu0 0.0
  %155 = vmatmul.mubr.f32.gmra.mrb[0].mxu0 %v65
  %v156 = vpop.f32.mrb[0].mxu0
  %v157 = vadd.f32 %v58, %v156
  %v158 = vpop.f32.mrb[0].mxu0
  %159 = vmatprep.mubr.f32.mxu0 0.0
  %160 = vmatmul.mubr.f32.gmra.mrb[0].mxu0 %v68
  %v161 = vpop.f32.mrb[0].mxu0
  %v162 = vadd.f32 %v58, %v161
  %v163 = vpop.f32.mrb[0].mxu0
  %164 = vmatprep.mubr.f32.mxu0 0.0
  %165 = vmatmul.mubr.f32.gmra.mrb[0].mxu0 %v71
  %v166 = vpop.f32.mrb[0].mxu0
  %v167 = vadd.f32 %v58, %v166
  %v168 = vpop.f32.mrb[0].mxu0
  %169 = vmatprep.mubr.f32.mxu0 0.0
  %170 = vmatmul.mubr.f32.gmra.mrb[0].mxu0 %v74
  %v171 = vpop.f32.mrb[0].mxu0
  %v172 = vadd.f32 %v58, %v171
  %v173 = vpop.f32.mrb[0].mxu0
  %174 = vmatprep.mubr.f32.mxu0 0.0
  %175 = vmatmul.mubr.f32.gmra.mrb[0].mxu0 %v77
  %v176 = vpop.f32.mrb[0].mxu0
  %v177 = vadd.f32 %v58, %v176
  %v178 = vpop.f32.mrb[0].mxu0
  %179 = vmatprep.mubr.f32.mxu0 0.0
  %180 = vmatmul.mubr.f32.gmra.mrb[0].mxu0 %v80
  %v181 = vpop.f32.mrb[0].mxu0
  %v182 = vadd.f32 %v58, %v181
  %v183 = vpop.f32.mrb[0].mxu0
  %184 = vmatprep.mubr.f32.mxu0 0.0
  %185 = vmatmul.mubr.f32.gmra.mrb[0].mxu0 %v83
  %v186 = vpop.f32.mrb[0].mxu0
  %v187 = vadd.f32 %v58, %v186
  %v188 = vpop.f32.mrb[0].mxu0
  %189 = vdwg.mxu0
  %v190 = vlaneseq
  %v191 = vand.u32 %v190, 127
  %vm192 = vcmp.ge.s32.totalorder %v191, 32
  %vm193 = vcmp.lt.s32.totalorder %v191, 48
  %vm194 = vmand %vm192, %vm193
  %vm195 = vcmask 130048
  %v197 = vsel %vm195, 0.0, 0
  %199 = vmatprep.subr.mxu0 0.0
  %200 = vmatpush1.msra.mxu0 %v30
  %201 = vmatprep.subr.mxu0 0.0
  %202 = vmatpush1.msra.mxu0 %v31
  %203 = vmatprep.subr.mxu0 0.0
  %204 = vmatpush1.msra.mxu0 0.0
  %205 = vmatprep.subr.mxu0 0.0
  %206 = vmatpush1.msra.mxu0 0.0
  %207 = vmatprep.subr.mxu0 0.0
  %208 = vmatpush1.msra.mxu0 0.0
  %209 = vmatprep.subr.mxu0 0.0
  %210 = vmatpush1.msra.mxu0 0.0
  %211 = vmatprep.subr.mxu0 0.0
  %212 = vmatpush1.msra.mxu0 0.0
  %213 = vmatprep.subr.mxu0 0.0
  %214 = vmatpush1.msra.mxu0 0.0
  %215 = vmatprep.subr.mxu0 0.0
  %216 = vmatpush1.msra.mxu0 0.0
  %217 = vmatprep.subr.mxu0 0.0
  %218 = vmatpush1.msra.mxu0 0.0
  %219 = vmatprep.subr.mxu0 0.0
  %220 = vmatpush1.msra.mxu0 0.0
  %221 = vmatprep.subr.mxu0 0.0
  %222 = vmatpush1.msra.mxu0 0.0
  %223 = vmatprep.subr.mxu0 0.0
  %224 = vmatpush1.msra.mxu0 0.0
  %225 = vmatprep.subr.mxu0 0.0
  %226 = vmatpush1.msra.mxu0 0.0
  %227 = vmatprep.subr.mxu0 0.0
  %228 = vmatpush1.msra.mxu0 0.0
  %229 = vmatprep.subr.mxu0 0.0
  %230 = vmatpush1.msra.mxu0 0.0
  %231 = vmatprep.subr.mxu0 0.0
  %232 = vmatpush1.msra.mxu0 0.0
  %233 = vmatprep.subr.mxu0 0.0
  %234 = vmatpush1.msra.mxu0 0.0
  %235 = vmatprep.subr.mxu0 0.0
  %236 = vmatpush1.msra.mxu0 0.0
  %237 = vmatprep.subr.mxu0 0.0
  %238 = vmatpush1.msra.mxu0 0.0
  %239 = vmatprep.subr.mxu0 0.0
  %240 = vmatpush1.msra.mxu0 0.0
  %241 = vmatprep.subr.mxu0 0.0
  %242 = vmatpush1.msra.mxu0 0.0
  %243 = vmatprep.subr.mxu0 0.0
  %244 = vmatpush1.msra.mxu0 0.0
  %245 = vmatprep.subr.mxu0 0.0
  %246 = vmatpush1.msra.mxu0 0.0
  %247 = vmatprep.subr.mxu0 0.0
  %248 = vmatpush1.msra.mxu0 0.0
  %249 = vmatprep.subr.mxu0 0.0
  %250 = vmatpush1.msra.mxu0 0.0
  %251 = vmatprep.subr.mxu0 0.0
  %252 = vmatpush1.msra.mxu0 0.0
  %253 = vmatprep.subr.mxu0 0.0
  %254 = vmatpush1.msra.mxu0 0.0
  %255 = vmatprep.subr.mxu0 0.0
  %256 = vmatpush1.msra.mxu0 0.0
  %257 = vmatprep.subr.mxu0 0.0
  %258 = vmatpush1.msra.mxu0 0.0
  %259 = vmatprep.subr.mxu0 0.0
  %260 = vmatpush1.msra.mxu0 0.0
  %261 = vmatprep.subr.mxu0 0.0
  %262 = vmatpush1.msra.mxu0 0.0
  %263 = vmatprep.mubr.f32.mxu0 0.0
  %264 = vmatmul.mubr.f32.gmra.mrb[0].mxu0 %v197
  %v265 = vpop.f32.mrb[0].mxu0
  %v266 = vadd.f32 0.0, %v265
  %v267 = vpop.f32.mrb[0].mxu0
  %268 = vdwg.mxu0
  %v269 = vadd.f32 %v152, %v266
  %v270 = vtanh.pop %v269
  %v271 = vxor.u32 %v269, 2147483648
  %v272 = vmul.f32 %v271, 1.442695
  %v273 = vpow.pop %v272
  %v274 = vadd.f32 %v273, 1.0
  %v275 = vrcp.pop %v274
  %v276 = vmul.f32 1.0, %v275
  %v277 = vsel %vm194, %v270, %v276
  %v278 = vmul.f32 %v277, 0.0
  %280 = vrot.lane.b32.xlu0 %v277, 96
  %v281 = vpop.permute.xlu0 %280
  %v283 = vmul.f32 %v277, %v281
  %285 = vrot.lane.b32.xlu0 %v283, 16
  %v286 = vpop.permute.xlu0 %285
  %v288 = vadd.f32 %v278, %v286
  %v289 = vtanh.pop %v288
  %291 = vrot.lane.b32.xlu0 %v289, 32
  %v292 = vpop.permute.xlu0 %291
  %v294 = vmul.f32 %v277, %v292
  %296 = vrot.lane.b32.xlu0 %v294, 80
  %v297 = vpop.permute.xlu0 %296
  %v299 = vsel %vm195, %v297, 0.0
  %vm300 = vcmask 261120
  %v302 = vsel %vm300, %v299, 0
  %304 = vmatprep.subr.mxu0 0.0
  %305 = vmatpush1.msra.mxu0 %v32
  %306 = vmatprep.subr.mxu0 0.0
  %307 = vmatpush1.msra.mxu0 %v33
  %308 = vmatprep.subr.mxu0 0.0
  %309 = vmatpush1.msra.mxu0 %v34
  %310 = vmatprep.subr.mxu0 0.0
  %311 = vmatpush1.msra.mxu0 %v35
  %312 = vmatprep.subr.mxu0 0.0
  %313 = vmatpush1.msra.mxu0 0.0
  %314 = vmatprep.subr.mxu0 0.0
  %315 = vmatpush1.msra.mxu0 0.0
  %316 = vmatprep.subr.mxu0 0.0
  %317 = vmatpush1.msra.mxu0 0.0
  %318 = vmatprep.subr.mxu0 0.0
  %319 = vmatpush1.msra.mxu0 0.0
  %320 = vmatprep.subr.mxu0 0.0
  %321 = vmatpush1.msra.mxu0 0.0
  %322 = vmatprep.subr.mxu0 0.0
  %323 = vmatpush1.msra.mxu0 0.0
  %324 = vmatprep.subr.mxu0 0.0
  %325 = vmatpush1.msra.mxu0 0.0
  %326 = vmatprep.subr.mxu0 0.0
  %327 = vmatpush1.msra.mxu0 0.0
  %328 = vmatprep.subr.mxu0 0.0
  %329 = vmatpush1.msra.mxu0 0.0
  %330 = vmatprep.subr.mxu0 0.0
  %331 = vmatpush1.msra.mxu0 0.0
  %332 = vmatprep.subr.mxu0 0.0
  %333 = vmatpush1.msra.mxu0 0.0
  %334 = vmatprep.subr.mxu0 0.0
  %335 = vmatpush1.msra.mxu0 0.0
  %336 = vmatprep.subr.mxu0 0.0
  %337 = vmatpush1.msra.mxu0 0.0
  %338 = vmatprep.subr.mxu0 0.0
  %339 = vmatpush1.msra.mxu0 0.0
  %340 = vmatprep.subr.mxu0 0.0
  %341 = vmatpush1.msra.mxu0 0.0
  %342 = vmatprep.subr.mxu0 0.0
  %343 = vmatpush1.msra.mxu0 0.0
  %344 = vmatprep.subr.mxu0 0.0
  %345 = vmatpush1.msra.mxu0 0.0
  %346 = vmatprep.subr.mxu0 0.0
  %347 = vmatpush1.msra.mxu0 0.0
  %348 = vmatprep.subr.mxu0 0.0
  %349 = vmatpush1.msra.mxu0 0.0
  %350 = vmatprep.subr.mxu0 0.0
  %351 = vmatpush1.msra.mxu0 0.0
  %352 = vmatprep.subr.mxu0 0.0
  %353 = vmatpush1.msra.mxu0 0.0
  %354 = vmatprep.subr.mxu0 0.0
  %355 = vmatpush1.msra.mxu0 0.0
  %356 = vmatprep.subr.mxu0 0.0
  %357 = vmatpush1.msra.mxu0 0.0
  %358 = vmatprep.subr.mxu0 0.0
  %359 = vmatpush1.msra.mxu0 0.0
  %360 = vmatprep.subr.mxu0 0.0
  %361 = vmatpush1.msra.mxu0 0.0
  %362 = vmatprep.subr.mxu0 0.0
  %363 = vmatpush1.msra.mxu0 0.0
  %364 = vmatprep.subr.mxu0 0.0
  %365 = vmatpush1.msra.mxu0 0.0
  %366 = vmatprep.subr.mxu0 0.0
  %367 = vmatpush1.msra.mxu0 0.0
  %368 = vmatprep.mubr.f32.mxu0 0.0
  %369 = vmatmul.mubr.f32.gmra.mrb[0].mxu0 %v302
  %v370 = vpop.f32.mrb[0].mxu0
  %v371 = vadd.f32 %v42, %v370
  %v372 = vpop.f32.mrb[0].mxu0
  %373 = vdwg.mxu0
  %v374 = vtanh.pop %v371
  %v375 = vxor.u32 %v371, 2147483648
  %v376 = vmul.f32 %v375, 1.442695
  %v377 = vpow.pop %v376
  %v378 = vadd.f32 %v377, 1.0
  %v379 = vrcp.pop %v378
  %v380 = vmul.f32 1.0, %v379
  %v381 = vsel %vm194, %v374, %v380
  %v382 = vmul.f32 %v381, 0.0
  %384 = vrot.lane.b32.xlu0 %v381, 96
  %v385 = vpop.permute.xlu0 %384
  %v387 = vmul.f32 %v381, %v385
  %389 = vrot.lane.b32.xlu0 %v387, 16
  %v390 = vpop.permute.xlu0 %389
  %v392 = vadd.f32 %v382, %v390
  %v393 = vtanh.pop %v392
  %395 = vrot.lane.b32.xlu0 %v393, 32
  %v396 = vpop.permute.xlu0 %395
  %v398 = vmul.f32 %v381, %v396
  %v399 = vlaneseq
  %v400 = vshrl.u32 %v399, 7
  %v401 = vsub.s32 0, %v400
  %v402 = vrot.slane %v36, %v401
  %404 = vrot.lane.b32.xlu0 %v402, 48
  %v405 = vpop.permute.xlu0 %404
  %v407 = vmul.f32 %v398, %v405
  %v408 = vadd.f32 %v407, 0.0
  %v409 = vsel %vm195, %v297, 0
  %411 = vmatprep.subr.mxu0 0.0
  %412 = vmatpush1.msra.mxu0 %v30
  %413 = vmatprep.subr.mxu0 0.0
  %414 = vmatpush1.msra.mxu0 %v31
  %415 = vmatprep.subr.mxu0 0.0
  %416 = vmatpush1.msra.mxu0 0.0
  %417 = vmatprep.subr.mxu0 0.0
  %418 = vmatpush1.msra.mxu0 0.0
  %419 = vmatprep.subr.mxu0 0.0
  %420 = vmatpush1.msra.mxu0 0.0
  %421 = vmatprep.subr.mxu0 0.0
  %422 = vmatpush1.msra.mxu0 0.0
  %423 = vmatprep.subr.mxu0 0.0
  %424 = vmatpush1.msra.mxu0 0.0
  %425 = vmatprep.subr.mxu0 0.0
  %426 = vmatpush1.msra.mxu0 0.0
  %427 = vmatprep.subr.mxu0 0.0
  %428 = vmatpush1.msra.mxu0 0.0
  %429 = vmatprep.subr.mxu0 0.0
  %430 = vmatpush1.msra.mxu0 0.0
  %431 = vmatprep.subr.mxu0 0.0
  %432 = vmatpush1.msra.mxu0 0.0
  %433 = vmatprep.subr.mxu0 0.0
  %434 = vmatpush1.msra.mxu0 0.0
  %435 = vmatprep.subr.mxu0 0.0
  %436 = vmatpush1.msra.mxu0 0.0
  %437 = vmatprep.subr.mxu0 0.0
  %438 = vmatpush1.msra.mxu0 0.0
  %439 = vmatprep.subr.mxu0 0.0
  %440 = vmatpush1.msra.mxu0 0.0
  %441 = vmatprep.subr.mxu0 0.0
  %442 = vmatpush1.msra.mxu0 0.0
  %443 = vmatprep.subr.mxu0 0.0
  %444 = vmatpush1.msra.mxu0 0.0
  %445 = vmatprep.subr.mxu0 0.0
  %446 = vmatpush1.msra.mxu0 0.0
  %447 = vmatprep.subr.mxu0 0.0
  %448 = vmatpush1.msra.mxu0 0.0
  %449 = vmatprep.subr.mxu0 0.0
  %450 = vmatpush1.msra.mxu0 0.0
  %451 = vmatprep.subr.mxu0 0.0
  %452 = vmatpush1.msra.mxu0 0.0
  %453 = vmatprep.subr.mxu0 0.0
  %454 = vmatpush1.msra.mxu0 0.0
  %455 = vmatprep.subr.mxu0 0.0
  %456 = vmatpush1.msra.mxu0 0.0
  %457 = vmatprep.subr.mxu0 0.0
  %458 = vmatpush1.msra.mxu0 0.0
  %459 = vmatprep.subr.mxu0 0.0
  %460 = vmatpush1.msra.mxu0 0.0
  %461 = vmatprep.subr.mxu0 0.0
  %462 = vmatpush1.msra.mxu0 0.0
  %463 = vmatprep.subr.mxu0 0.0
  %464 = vmatpush1.msra.mxu0 0.0
  %465 = vmatprep.subr.mxu0 0.0
  %466 = vmatpush1.msra.mxu0 0.0
  %467 = vmatprep.subr.mxu0 0.0
  %468 = vmatpush1.msra.mxu0 0.0
  %469 = vmatprep.subr.mxu0 0.0
  %470 = vmatpush1.msra.mxu0 0.0
  %471 = vmatprep.subr.mxu0 0.0
  %472 = vmatpush1.msra.mxu0 0.0
  %473 = vmatprep.subr.mxu0 0.0
  %474 = vmatpush1.msra.mxu0 0.0
  %475 = vmatprep.mubr.f32.mxu0 0.0
  %476 = vmatmul.mubr.f32.gmra.mrb[0].mxu0 %v409
  %v477 = vpop.f32.mrb[0].mxu0
  %v478 = vadd.f32 0.0, %v477
  %v479 = vpop.f32.mrb[0].mxu0
  %480 = vdwg.mxu0
  %v481 = vadd.f32 %v157, %v478
  %v482 = vtanh.pop %v481
  %v483 = vxor.u32 %v481, 2147483648
  %v484 = vmul.f32 %v483, 1.442695
  %v485 = vpow.pop %v484
  %v486 = vadd.f32 %v485, 1.0
  %v487 = vrcp.pop %v486
  %v488 = vmul.f32 1.0, %v487
  %v489 = vsel %vm194, %v482, %v488
  %v490 = vmul.f32 %v489, %v288
  %492 = vrot.lane.b32.xlu0 %v489, 96
  %v493 = vpop.permute.xlu0 %492
  %v495 = vmul.f32 %v489, %v493
  %497 = vrot.lane.b32.xlu0 %v495, 16
  %v498 = vpop.permute.xlu0 %497
  %v500 = vadd.f32 %v490, %v498
  %v501 = vtanh.pop %v500
  %503 = vrot.lane.b32.xlu0 %v501, 32
  %v504 = vpop.permute.xlu0 %503
  %v506 = vmul.f32 %v489, %v504
  %508 = vrot.lane.b32.xlu0 %v506, 80
  %v509 = vpop.permute.xlu0 %508
  %512 = vrot.lane.b32.xlu0 %v398, 96
  %v513 = vpop.permute.xlu0 %512
  %v515 = vsel %vm195, %v509, %v513
  %v517 = vsel %vm300, %v515, 0
  %519 = vmatprep.subr.mxu0 0.0
  %520 = vmatpush1.msra.mxu0 %v32
  %521 = vmatprep.subr.mxu0 0.0
  %522 = vmatpush1.msra.mxu0 %v33
  %523 = vmatprep.subr.mxu0 0.0
  %524 = vmatpush1.msra.mxu0 %v34
  %525 = vmatprep.subr.mxu0 0.0
  %526 = vmatpush1.msra.mxu0 %v35
  %527 = vmatprep.subr.mxu0 0.0
  %528 = vmatpush1.msra.mxu0 0.0
  %529 = vmatprep.subr.mxu0 0.0
  %530 = vmatpush1.msra.mxu0 0.0
  %531 = vmatprep.subr.mxu0 0.0
  %532 = vmatpush1.msra.mxu0 0.0
  %533 = vmatprep.subr.mxu0 0.0
  %534 = vmatpush1.msra.mxu0 0.0
  %535 = vmatprep.subr.mxu0 0.0
  %536 = vmatpush1.msra.mxu0 0.0
  %537 = vmatprep.subr.mxu0 0.0
  %538 = vmatpush1.msra.mxu0 0.0
  %539 = vmatprep.subr.mxu0 0.0
  %540 = vmatpush1.msra.mxu0 0.0
  %541 = vmatprep.subr.mxu0 0.0
  %542 = vmatpush1.msra.mxu0 0.0
  %543 = vmatprep.subr.mxu0 0.0
  %544 = vmatpush1.msra.mxu0 0.0
  %545 = vmatprep.subr.mxu0 0.0
  %546 = vmatpush1.msra.mxu0 0.0
  %547 = vmatprep.subr.mxu0 0.0
  %548 = vmatpush1.msra.mxu0 0.0
  %549 = vmatprep.subr.mxu0 0.0
  %550 = vmatpush1.msra.mxu0 0.0
  %551 = vmatprep.subr.mxu0 0.0
  %552 = vmatpush1.msra.mxu0 0.0
  %553 = vmatprep.subr.mxu0 0.0
  %554 = vmatpush1.msra.mxu0 0.0
  %555 = vmatprep.subr.mxu0 0.0
  %556 = vmatpush1.msra.mxu0 0.0
  %557 = vmatprep.subr.mxu0 0.0
  %558 = vmatpush1.msra.mxu0 0.0
  %559 = vmatprep.subr.mxu0 0.0
  %560 = vmatpush1.msra.mxu0 0.0
  %561 = vmatprep.subr.mxu0 0.0
  %562 = vmatpush1.msra.mxu0 0.0
  %563 = vmatprep.subr.mxu0 0.0
  %564 = vmatpush1.msra.mxu0 0.0
  %565 = vmatprep.subr.mxu0 0.0
  %566 = vmatpush1.msra.mxu0 0.0
  %567 = vmatprep.subr.mxu0 0.0
  %568 = vmatpush1.msra.mxu0 0.0
  %569 = vmatprep.subr.mxu0 0.0
  %570 = vmatpush1.msra.mxu0 0.0
  %571 = vmatprep.subr.mxu0 0.0
  %572 = vmatpush1.msra.mxu0 0.0
  %573 = vmatprep.subr.mxu0 0.0
  %574 = vmatpush1.msra.mxu0 0.0
  %575 = vmatprep.subr.mxu0 0.0
  %576 = vmatpush1.msra.mxu0 0.0
  %577 = vmatprep.subr.mxu0 0.0
  %578 = vmatpush1.msra.mxu0 0.0
  %579 = vmatprep.subr.mxu0 0.0
  %580 = vmatpush1.msra.mxu0 0.0
  %581 = vmatprep.subr.mxu0 0.0
  %582 = vmatpush1.msra.mxu0 0.0
  %583 = vmatprep.mubr.f32.mxu0 0.0
  %584 = vmatmul.mubr.f32.gmra.mrb[0].mxu0 %v517
  %v585 = vpop.f32.mrb[0].mxu0
  %v586 = vadd.f32 %v42, %v585
  %v587 = vpop.f32.mrb[0].mxu0
  %588 = vdwg.mxu0
  %v589 = vtanh.pop %v586
  %v590 = vxor.u32 %v586, 2147483648
  %v591 = vmul.f32 %v590, 1.442695
  %v592 = vpow.pop %v591
  %v593 = vadd.f32 %v592, 1.0
  %v594 = vrcp.pop %v593
  %v595 = vmul.f32 1.0, %v594
  %v596 = vsel %vm194, %v589, %v595
  %v597 = vmul.f32 %v596, %v392
  %599 = vrot.lane.b32.xlu0 %v596, 96
  %v600 = vpop.permute.xlu0 %599
  %v602 = vmul.f32 %v596, %v600
  %604 = vrot.lane.b32.xlu0 %v602, 16
  %v605 = vpop.permute.xlu0 %604
  %v607 = vadd.f32 %v597, %v605
  %v608 = vtanh.pop %v607
  %610 = vrot.lane.b32.xlu0 %v608, 32
  %v611 = vpop.permute.xlu0 %610
  %v613 = vmul.f32 %v596, %v611
  %v614 = vlaneseq
  %v615 = vshrl.u32 %v614, 7
  %v616 = vsub.s32 1, %v615
  %v617 = vrot.slane %v36, %v616
  %619 = vrot.lane.b32.xlu0 %v617, 48
  %v620 = vpop.permute.xlu0 %619
  %v622 = vmul.f32 %v613, %v620
  %v623 = vadd.f32 %v408, %v622
  %v624 = vsel %vm195, %v509, 0
  %626 = vmatprep.subr.mxu0 0.0
  %627 = vmatpush1.msra.mxu0 %v30
  %628 = vmatprep.subr.mxu0 0.0
  %629 = vmatpush1.msra.mxu0 %v31
  %630 = vmatprep.subr.mxu0 0.0
  %631 = vmatpush1.msra.mxu0 0.0
  %632 = vmatprep.subr.mxu0 0.0
  %633 = vmatpush1.msra.mxu0 0.0
  %634 = vmatprep.subr.mxu0 0.0
  %635 = vmatpush1.msra.mxu0 0.0
  %636 = vmatprep.subr.mxu0 0.0
  %637 = vmatpush1.msra.mxu0 0.0
  %638 = vmatprep.subr.mxu0 0.0
  %639 = vmatpush1.msra.mxu0 0.0
  %640 = vmatprep.subr.mxu0 0.0
  %641 = vmatpush1.msra.mxu0 0.0
  %642 = vmatprep.subr.mxu0 0.0
  %643 = vmatpush1.msra.mxu0 0.0
  %644 = vmatprep.subr.mxu0 0.0
  %645 = vmatpush1.msra.mxu0 0.0
  %646 = vmatprep.subr.mxu0 0.0
  %647 = vmatpush1.msra.mxu0 0.0
  %648 = vmatprep.subr.mxu0 0.0
  %649 = vmatpush1.msra.mxu0 0.0
  %650 = vmatprep.subr.mxu0 0.0
  %651 = vmatpush1.msra.mxu0 0.0
  %652 = vmatprep.subr.mxu0 0.0
  %653 = vmatpush1.msra.mxu0 0.0
  %654 = vmatprep.subr.mxu0 0.0
  %655 = vmatpush1.msra.mxu0 0.0
  %656 = vmatprep.subr.mxu0 0.0
  %657 = vmatpush1.msra.mxu0 0.0
  %658 = vmatprep.subr.mxu0 0.0
  %659 = vmatpush1.msra.mxu0 0.0
  %660 = vmatprep.subr.mxu0 0.0
  %661 = vmatpush1.msra.mxu0 0.0
  %662 = vmatprep.subr.mxu0 0.0
  %663 = vmatpush1.msra.mxu0 0.0
  %664 = vmatprep.subr.mxu0 0.0
  %665 = vmatpush1.msra.mxu0 0.0
  %666 = vmatprep.subr.mxu0 0.0
  %667 = vmatpush1.msra.mxu0 0.0
  %668 = vmatprep.subr.mxu0 0.0
  %669 = vmatpush1.msra.mxu0 0.0
  %670 = vmatprep.subr.mxu0 0.0
  %671 = vmatpush1.msra.mxu0 0.0
  %672 = vmatprep.subr.mxu0 0.0
  %673 = vmatpush1.msra.mxu0 0.0
  %674 = vmatprep.subr.mxu0 0.0
  %675 = vmatpush1.msra.mxu0 0.0
  %676 = vmatprep.subr.mxu0 0.0
  %677 = vmatpush1.msra.mxu0 0.0
  %678 = vmatprep.subr.mxu0 0.0
  %679 = vmatpush1.msra.mxu0 0.0
  %680 = vmatprep.subr.mxu0 0.0
  %681 = vmatpush1.msra.mxu0 0.0
  %682 = vmatprep.subr.mxu0 0.0
  %683 = vmatpush1.msra.mxu0 0.0
  %684 = vmatprep.subr.mxu0 0.0
  %685 = vmatpush1.msra.mxu0 0.0
  %686 = vmatprep.subr.mxu0 0.0
  %687 = vmatpush1.msra.mxu0 0.0
  %688 = vmatprep.subr.mxu0 0.0
  %689 = vmatpush1.msra.mxu0 0.0
  %690 = vmatprep.mubr.f32.mxu0 0.0
  %691 = vmatmul.mubr.f32.gmra.mrb[0].mxu0 %v624
  %v692 = vpop.f32.mrb[0].mxu0
  %v693 = vadd.f32 0.0, %v692
  %v694 = vpop.f32.mrb[0].mxu0
  %695 = vdwg.mxu0
  %v696 = vadd.f32 %v162, %v693
  %v697 = vtanh.pop %v696
  %v698 = vxor.u32 %v696, 2147483648
  %v699 = vmul.f32 %v698, 1.442695
  %v700 = vpow.pop %v699
  %v701 = vadd.f32 %v700, 1.0
  %v702 = vrcp.pop %v701
  %v703 = vmul.f32 1.0, %v702
  %v704 = vsel %vm194, %v697, %v703
  %v705 = vmul.f32 %v704, %v500
  %707 = vrot.lane.b32.xlu0 %v704, 96
  %v708 = vpop.permute.xlu0 %707
  %v710 = vmul.f32 %v704, %v708
  %712 = vrot.lane.b32.xlu0 %v710, 16
  %v713 = vpop.permute.xlu0 %712
  %v715 = vadd.f32 %v705, %v713
  %v716 = vtanh.pop %v715
  %718 = vrot.lane.b32.xlu0 %v716, 32
  %v719 = vpop.permute.xlu0 %718
  %v721 = vmul.f32 %v704, %v719
  %723 = vrot.lane.b32.xlu0 %v721, 80
  %v724 = vpop.permute.xlu0 %723
  %727 = vrot.lane.b32.xlu0 %v613, 96
  %v728 = vpop.permute.xlu0 %727
  %v730 = vsel %vm195, %v724, %v728
  %v732 = vsel %vm300, %v730, 0
  %734 = vmatprep.subr.mxu0 0.0
  %735 = vmatpush1.msra.mxu0 %v32
  %736 = vmatprep.subr.mxu0 0.0
  %737 = vmatpush1.msra.mxu0 %v33
  %738 = vmatprep.subr.mxu0 0.0
  %739 = vmatpush1.msra.mxu0 %v34
  %740 = vmatprep.subr.mxu0 0.0
  %741 = vmatpush1.msra.mxu0 %v35
  %742 = vmatprep.subr.mxu0 0.0
  %743 = vmatpush1.msra.mxu0 0.0
  %744 = vmatprep.subr.mxu0 0.0
  %745 = vmatpush1.msra.mxu0 0.0
  %746 = vmatprep.subr.mxu0 0.0
  %747 = vmatpush1.msra.mxu0 0.0
  %748 = vmatprep.subr.mxu0 0.0
  %749 = vmatpush1.msra.mxu0 0.0
  %750 = vmatprep.subr.mxu0 0.0
  %751 = vmatpush1.msra.mxu0 0.0
  %752 = vmatprep.subr.mxu0 0.0
  %753 = vmatpush1.msra.mxu0 0.0
  %754 = vmatprep.subr.mxu0 0.0
  %755 = vmatpush1.msra.mxu0 0.0
  %756 = vmatprep.subr.mxu0 0.0
  %757 = vmatpush1.msra.mxu0 0.0
  %758 = vmatprep.subr.mxu0 0.0
  %759 = vmatpush1.msra.mxu0 0.0
  %760 = vmatprep.subr.mxu0 0.0
  %761 = vmatpush1.msra.mxu0 0.0
  %762 = vmatprep.subr.mxu0 0.0
  %763 = vmatpush1.msra.mxu0 0.0
  %764 = vmatprep.subr.mxu0 0.0
  %765 = vmatpush1.msra.mxu0 0.0
  %766 = vmatprep.subr.mxu0 0.0
  %767 = vmatpush1.msra.mxu0 0.0
  %768 = vmatprep.subr.mxu0 0.0
  %769 = vmatpush1.msra.mxu0 0.0
  %770 = vmatprep.subr.mxu0 0.0
  %771 = vmatpush1.msra.mxu0 0.0
  %772 = vmatprep.subr.mxu0 0.0
  %773 = vmatpush1.msra.mxu0 0.0
  %774 = vmatprep.subr.mxu0 0.0
  %775 = vmatpush1.msra.mxu0 0.0
  %776 = vmatprep.subr.mxu0 0.0
  %777 = vmatpush1.msra.mxu0 0.0
  %778 = vmatprep.subr.mxu0 0.0
  %779 = vmatpush1.msra.mxu0 0.0
  %780 = vmatprep.subr.mxu0 0.0
  %781 = vmatpush1.msra.mxu0 0.0
  %782 = vmatprep.subr.mxu0 0.0
  %783 = vmatpush1.msra.mxu0 0.0
  %784 = vmatprep.subr.mxu0 0.0
  %785 = vmatpush1.msra.mxu0 0.0
  %786 = vmatprep.subr.mxu0 0.0
  %787 = vmatpush1.msra.mxu0 0.0
  %788 = vmatprep.subr.mxu0 0.0
  %789 = vmatpush1.msra.mxu0 0.0
  %790 = vmatprep.subr.mxu0 0.0
  %791 = vmatpush1.msra.mxu0 0.0
  %792 = vmatprep.subr.mxu0 0.0
  %793 = vmatpush1.msra.mxu0 0.0
  %794 = vmatprep.subr.mxu0 0.0
  %795 = vmatpush1.msra.mxu0 0.0
  %796 = vmatprep.subr.mxu0 0.0
  %797 = vmatpush1.msra.mxu0 0.0
  %798 = vmatprep.mubr.f32.mxu0 0.0
  %799 = vmatmul.mubr.f32.gmra.mrb[0].mxu0 %v732
  %v800 = vpop.f32.mrb[0].mxu0
  %v801 = vadd.f32 %v42, %v800
  %v802 = vpop.f32.mrb[0].mxu0
  %803 = vdwg.mxu0
  %v804 = vtanh.pop %v801
  %v805 = vxor.u32 %v801, 2147483648
  %v806 = vmul.f32 %v805, 1.442695
  %v807 = vpow.pop %v806
  %v808 = vadd.f32 %v807, 1.0
  %v809 = vrcp.pop %v808
  %v810 = vmul.f32 1.0, %v809
  %v811 = vsel %vm194, %v804, %v810
  %v812 = vmul.f32 %v811, %v607
  %814 = vrot.lane.b32.xlu0 %v811, 96
  %v815 = vpop.permute.xlu0 %814
  %v817 = vmul.f32 %v811, %v815
  %819 = vrot.lane.b32.xlu0 %v817, 16
  %v820 = vpop.permute.xlu0 %819
  %v822 = vadd.f32 %v812, %v820
  %v823 = vtanh.pop %v822
  %825 = vrot.lane.b32.xlu0 %v823, 32
  %v826 = vpop.permute.xlu0 %825
  %v828 = vmul.f32 %v811, %v826
  %v829 = vlaneseq
  %v830 = vshrl.u32 %v829, 7
  %v831 = vsub.s32 2, %v830
  %v832 = vrot.slane %v36, %v831
  %834 = vrot.lane.b32.xlu0 %v832, 48
  %v835 = vpop.permute.xlu0 %834
  %v837 = vmul.f32 %v828, %v835
  %v838 = vadd.f32 %v623, %v837
  %v839 = vsel %vm195, %v724, 0
  %841 = vmatprep.subr.mxu0 0.0
  %842 = vmatpush1.msra.mxu0 %v30
  %843 = vmatprep.subr.mxu0 0.0
  %844 = vmatpush1.msra.mxu0 %v31
  %845 = vmatprep.subr.mxu0 0.0
  %846 = vmatpush1.msra.mxu0 0.0
  %847 = vmatprep.subr.mxu0 0.0
  %848 = vmatpush1.msra.mxu0 0.0
  %849 = vmatprep.subr.mxu0 0.0
  %850 = vmatpush1.msra.mxu0 0.0
  %851 = vmatprep.subr.mxu0 0.0
  %852 = vmatpush1.msra.mxu0 0.0
  %853 = vmatprep.subr.mxu0 0.0
  %854 = vmatpush1.msra.mxu0 0.0
  %855 = vmatprep.subr.mxu0 0.0
  %856 = vmatpush1.msra.mxu0 0.0
  %857 = vmatprep.subr.mxu0 0.0
  %858 = vmatpush1.msra.mxu0 0.0
  %859 = vmatprep.subr.mxu0 0.0
  %860 = vmatpush1.msra.mxu0 0.0
  %861 = vmatprep.subr.mxu0 0.0
  %862 = vmatpush1.msra.mxu0 0.0
  %863 = vmatprep.subr.mxu0 0.0
  %864 = vmatpush1.msra.mxu0 0.0
  %865 = vmatprep.subr.mxu0 0.0
  %866 = vmatpush1.msra.mxu0 0.0
  %867 = vmatprep.subr.mxu0 0.0
  %868 = vmatpush1.msra.mxu0 0.0
  %869 = vmatprep.subr.mxu0 0.0
  %870 = vmatpush1.msra.mxu0 0.0
  %871 = vmatprep.subr.mxu0 0.0
  %872 = vmatpush1.msra.mxu0 0.0
  %873 = vmatprep.subr.mxu0 0.0
  %874 = vmatpush1.msra.mxu0 0.0
  %875 = vmatprep.subr.mxu0 0.0
  %876 = vmatpush1.msra.mxu0 0.0
  %877 = vmatprep.subr.mxu0 0.0
  %878 = vmatpush1.msra.mxu0 0.0
  %879 = vmatprep.subr.mxu0 0.0
  %880 = vmatpush1.msra.mxu0 0.0
  %881 = vmatprep.subr.mxu0 0.0
  %882 = vmatpush1.msra.mxu0 0.0
  %883 = vmatprep.subr.mxu0 0.0
  %884 = vmatpush1.msra.mxu0 0.0
  %885 = vmatprep.subr.mxu0 0.0
  %886 = vmatpush1.msra.mxu0 0.0
  %887 = vmatprep.subr.mxu0 0.0
  %888 = vmatpush1.msra.mxu0 0.0
  %889 = vmatprep.subr.mxu0 0.0
  %890 = vmatpush1.msra.mxu0 0.0
  %891 = vmatprep.subr.mxu0 0.0
  %892 = vmatpush1.msra.mxu0 0.0
  %893 = vmatprep.subr.mxu0 0.0
  %894 = vmatpush1.msra.mxu0 0.0
  %895 = vmatprep.subr.mxu0 0.0
  %896 = vmatpush1.msra.mxu0 0.0
  %897 = vmatprep.subr.mxu0 0.0
  %898 = vmatpush1.msra.mxu0 0.0
  %899 = vmatprep.subr.mxu0 0.0
  %900 = vmatpush1.msra.mxu0 0.0
  %901 = vmatprep.subr.mxu0 0.0
  %902 = vmatpush1.msra.mxu0 0.0
  %903 = vmatprep.subr.mxu0 0.0
  %904 = vmatpush1.msra.mxu0 0.0
  %905 = vmatprep.mubr.f32.mxu0 0.0
  %906 = vmatmul.mubr.f32.gmra.mrb[0].mxu0 %v839
  %v907 = vpop.f32.mrb[0].mxu0
  %v908 = vadd.f32 0.0, %v907
  %v909 = vpop.f32.mrb[0].mxu0
  %910 = vdwg.mxu0
  %v911 = vadd.f32 %v167, %v908
  %v912 = vtanh.pop %v911
  %v913 = vxor.u32 %v911, 2147483648
  %v914 = vmul.f32 %v913, 1.442695
  %v915 = vpow.pop %v914
  %v916 = vadd.f32 %v915, 1.0
  %v917 = vrcp.pop %v916
  %v918 = vmul.f32 1.0, %v917
  %v919 = vsel %vm194, %v912, %v918
  %v920 = vmul.f32 %v919, %v715
  %922 = vrot.lane.b32.xlu0 %v919, 96
  %v923 = vpop.permute.xlu0 %922
  %v925 = vmul.f32 %v919, %v923
  %927 = vrot.lane.b32.xlu0 %v925, 16
  %v928 = vpop.permute.xlu0 %927
  %v930 = vadd.f32 %v920, %v928
  %v931 = vtanh.pop %v930
  %933 = vrot.lane.b32.xlu0 %v931, 32
  %v934 = vpop.permute.xlu0 %933
  %v936 = vmul.f32 %v919, %v934
  %938 = vrot.lane.b32.xlu0 %v936, 80
  %v939 = vpop.permute.xlu0 %938
  %942 = vrot.lane.b32.xlu0 %v828, 96
  %v943 = vpop.permute.xlu0 %942
  %v945 = vsel %vm195, %v939, %v943
  %v947 = vsel %vm300, %v945, 0
  %949 = vmatprep.subr.mxu0 0.0
  %950 = vmatpush1.msra.mxu0 %v32
  %951 = vmatprep.subr.mxu0 0.0
  %952 = vmatpush1.msra.mxu0 %v33
  %953 = vmatprep.subr.mxu0 0.0
  %954 = vmatpush1.msra.mxu0 %v34
  %955 = vmatprep.subr.mxu0 0.0
  %956 = vmatpush1.msra.mxu0 %v35
  %957 = vmatprep.subr.mxu0 0.0
  %958 = vmatpush1.msra.mxu0 0.0
  %959 = vmatprep.subr.mxu0 0.0
  %960 = vmatpush1.msra.mxu0 0.0
  %961 = vmatprep.subr.mxu0 0.0
  %962 = vmatpush1.msra.mxu0 0.0
  %963 = vmatprep.subr.mxu0 0.0
  %964 = vmatpush1.msra.mxu0 0.0
  %965 = vmatprep.subr.mxu0 0.0
  %966 = vmatpush1.msra.mxu0 0.0
  %967 = vmatprep.subr.mxu0 0.0
  %968 = vmatpush1.msra.mxu0 0.0
  %969 = vmatprep.subr.mxu0 0.0
  %970 = vmatpush1.msra.mxu0 0.0
  %971 = vmatprep.subr.mxu0 0.0
  %972 = vmatpush1.msra.mxu0 0.0
  %973 = vmatprep.subr.mxu0 0.0
  %974 = vmatpush1.msra.mxu0 0.0
  %975 = vmatprep.subr.mxu0 0.0
  %976 = vmatpush1.msra.mxu0 0.0
  %977 = vmatprep.subr.mxu0 0.0
  %978 = vmatpush1.msra.mxu0 0.0
  %979 = vmatprep.subr.mxu0 0.0
  %980 = vmatpush1.msra.mxu0 0.0
  %981 = vmatprep.subr.mxu0 0.0
  %982 = vmatpush1.msra.mxu0 0.0
  %983 = vmatprep.subr.mxu0 0.0
  %984 = vmatpush1.msra.mxu0 0.0
  %985 = vmatprep.subr.mxu0 0.0
  %986 = vmatpush1.msra.mxu0 0.0
  %987 = vmatprep.subr.mxu0 0.0
  %988 = vmatpush1.msra.mxu0 0.0
  %989 = vmatprep.subr.mxu0 0.0
  %990 = vmatpush1.msra.mxu0 0.0
  %991 = vmatprep.subr.mxu0 0.0
  %992 = vmatpush1.msra.mxu0 0.0
  %993 = vmatprep.subr.mxu0 0.0
  %994 = vmatpush1.msra.mxu0 0.0
  %995 = vmatprep.subr.mxu0 0.0
  %996 = vmatpush1.msra.mxu0 0.0
  %997 = vmatprep.subr.mxu0 0.0
  %998 = vmatpush1.msra.mxu0 0.0
  %999 = vmatprep.subr.mxu0 0.0
  %1000 = vmatpush1.msra.mxu0 0.0
  %1001 = vmatprep.subr.mxu0 0.0
  %1002 = vmatpush1.msra.mxu0 0.0
  %1003 = vmatprep.subr.mxu0 0.0
  %1004 = vmatpush1.msra.mxu0 0.0
  %1005 = vmatprep.subr.mxu0 0.0
  %1006 = vmatpush1.msra.mxu0 0.0
  %1007 = vmatprep.subr.mxu0 0.0
  %1008 = vmatpush1.msra.mxu0 0.0
  %1009 = vmatprep.subr.mxu0 0.0
  %1010 = vmatpush1.msra.mxu0 0.0
  %1011 = vmatprep.subr.mxu0 0.0
  %1012 = vmatpush1.msra.mxu0 0.0
  %1013 = vmatprep.mubr.f32.mxu0 0.0
  %1014 = vmatmul.mubr.f32.gmra.mrb[0].mxu0 %v947
  %v1015 = vpop.f32.mrb[0].mxu0
  %v1016 = vadd.f32 %v42, %v1015
  %v1017 = vpop.f32.mrb[0].mxu0
  %1018 = vdwg.mxu0
  %v1019 = vtanh.pop %v1016
  %v1020 = vxor.u32 %v1016, 2147483648
  %v1021 = vmul.f32 %v1020, 1.442695
  %v1022 = vpow.pop %v1021
  %v1023 = vadd.f32 %v1022, 1.0
  %v1024 = vrcp.pop %v1023
  %v1025 = vmul.f32 1.0, %v1024
  %v1026 = vsel %vm194, %v1019, %v1025
  %v1027 = vmul.f32 %v1026, %v822
  %1029 = vrot.lane.b32.xlu0 %v1026, 96
  %v1030 = vpop.permute.xlu0 %1029
  %v1032 = vmul.f32 %v1026, %v1030
  %1034 = vrot.lane.b32.xlu0 %v1032, 16
  %v1035 = vpop.permute.xlu0 %1034
  %v1037 = vadd.f32 %v1027, %v1035
  %v1038 = vtanh.pop %v1037
  %1040 = vrot.lane.b32.xlu0 %v1038, 32
  %v1041 = vpop.permute.xlu0 %1040
  %v1043 = vmul.f32 %v1026, %v1041
  %v1044 = vlaneseq
  %v1045 = vshrl.u32 %v1044, 7
  %v1046 = vsub.s32 3, %v1045
  %v1047 = vrot.slane %v36, %v1046
  %1049 = vrot.lane.b32.xlu0 %v1047, 48
  %v1050 = vpop.permute.xlu0 %1049
  %v1052 = vmul.f32 %v1043, %v1050
  %v1053 = vadd.f32 %v838, %v1052
  %v1054 = vsel %vm195, %v939, 0
  %1056 = vmatprep.subr.mxu0 0.0
  %1057 = vmatpush1.msra.mxu0 %v30
  %1058 = vmatprep.subr.mxu0 0.0
  %1059 = vmatpush1.msra.mxu0 %v31
  %1060 = vmatprep.subr.mxu0 0.0
  %1061 = vmatpush1.msra.mxu0 0.0
  %1062 = vmatprep.subr.mxu0 0.0
  %1063 = vmatpush1.msra.mxu0 0.0
  %1064 = vmatprep.subr.mxu0 0.0
  %1065 = vmatpush1.msra.mxu0 0.0
  %1066 = vmatprep.subr.mxu0 0.0
  %1067 = vmatpush1.msra.mxu0 0.0
  %1068 = vmatprep.subr.mxu0 0.0
  %1069 = vmatpush1.msra.mxu0 0.0
  %1070 = vmatprep.subr.mxu0 0.0
  %1071 = vmatpush1.msra.mxu0 0.0
  %1072 = vmatprep.subr.mxu0 0.0
  %1073 = vmatpush1.msra.mxu0 0.0
  %1074 = vmatprep.subr.mxu0 0.0
  %1075 = vmatpush1.msra.mxu0 0.0
  %1076 = vmatprep.subr.mxu0 0.0
  %1077 = vmatpush1.msra.mxu0 0.0
  %1078 = vmatprep.subr.mxu0 0.0
  %1079 = vmatpush1.msra.mxu0 0.0
  %1080 = vmatprep.subr.mxu0 0.0
  %1081 = vmatpush1.msra.mxu0 0.0
  %1082 = vmatprep.subr.mxu0 0.0
  %1083 = vmatpush1.msra.mxu0 0.0
  %1084 = vmatprep.subr.mxu0 0.0
  %1085 = vmatpush1.msra.mxu0 0.0
  %1086 = vmatprep.subr.mxu0 0.0
  %1087 = vmatpush1.msra.mxu0 0.0
  %1088 = vmatprep.subr.mxu0 0.0
  %1089 = vmatpush1.msra.mxu0 0.0
  %1090 = vmatprep.subr.mxu0 0.0
  %1091 = vmatpush1.msra.mxu0 0.0
  %1092 = vmatprep.subr.mxu0 0.0
  %1093 = vmatpush1.msra.mxu0 0.0
  %1094 = vmatprep.subr.mxu0 0.0
  %1095 = vmatpush1.msra.mxu0 0.0
  %1096 = vmatprep.subr.mxu0 0.0
  %1097 = vmatpush1.msra.mxu0 0.0
  %1098 = vmatprep.subr.mxu0 0.0
  %1099 = vmatpush1.msra.mxu0 0.0
  %1100 = vmatprep.subr.mxu0 0.0
  %1101 = vmatpush1.msra.mxu0 0.0
  %1102 = vmatprep.subr.mxu0 0.0
  %1103 = vmatpush1.msra.mxu0 0.0
  %1104 = vmatprep.subr.mxu0 0.0
  %1105 = vmatpush1.msra.mxu0 0.0
  %1106 = vmatprep.subr.mxu0 0.0
  %1107 = vmatpush1.msra.mxu0 0.0
  %1108 = vmatprep.subr.mxu0 0.0
  %1109 = vmatpush1.msra.mxu0 0.0
  %1110 = vmatprep.subr.mxu0 0.0
  %1111 = vmatpush1.msra.mxu0 0.0
  %1112 = vmatprep.subr.mxu0 0.0
  %1113 = vmatpush1.msra.mxu0 0.0
  %1114 = vmatprep.subr.mxu0 0.0
  %1115 = vmatpush1.msra.mxu0 0.0
  %1116 = vmatprep.subr.mxu0 0.0
  %1117 = vmatpush1.msra.mxu0 0.0
  %1118 = vmatprep.subr.mxu0 0.0
  %1119 = vmatpush1.msra.mxu0 0.0
  %1120 = vmatprep.mubr.f32.mxu0 0.0
  %1121 = vmatmul.mubr.f32.gmra.mrb[0].mxu0 %v1054
  %v1122 = vpop.f32.mrb[0].mxu0
  %v1123 = vadd.f32 0.0, %v1122
  %v1124 = vpop.f32.mrb[0].mxu0
  %1125 = vdwg.mxu0
  %v1126 = vadd.f32 %v172, %v1123
  %v1127 = vtanh.pop %v1126
  %v1128 = vxor.u32 %v1126, 2147483648
  %v1129 = vmul.f32 %v1128, 1.442695
  %v1130 = vpow.pop %v1129
  %v1131 = vadd.f32 %v1130, 1.0
  %v1132 = vrcp.pop %v1131
  %v1133 = vmul.f32 1.0, %v1132
  %v1134 = vsel %vm194, %v1127, %v1133
  %v1135 = vmul.f32 %v1134, %v930
  %1137 = vrot.lane.b32.xlu0 %v1134, 96
  %v1138 = vpop.permute.xlu0 %1137
  %v1140 = vmul.f32 %v1134, %v1138
  %1142 = vrot.lane.b32.xlu0 %v1140, 16
  %v1143 = vpop.permute.xlu0 %1142
  %v1145 = vadd.f32 %v1135, %v1143
  %v1146 = vtanh.pop %v1145
  %1148 = vrot.lane.b32.xlu0 %v1146, 32
  %v1149 = vpop.permute.xlu0 %1148
  %v1151 = vmul.f32 %v1134, %v1149
  %1153 = vrot.lane.b32.xlu0 %v1151, 80
  %v1154 = vpop.permute.xlu0 %1153
  %1157 = vrot.lane.b32.xlu0 %v1043, 96
  %v1158 = vpop.permute.xlu0 %1157
  %v1160 = vsel %vm195, %v1154, %v1158
  %v1162 = vsel %vm300, %v1160, 0
  %1164 = vmatprep.subr.mxu0 0.0
  %1165 = vmatpush1.msra.mxu0 %v32
  %1166 = vmatprep.subr.mxu0 0.0
  %1167 = vmatpush1.msra.mxu0 %v33
  %1168 = vmatprep.subr.mxu0 0.0
  %1169 = vmatpush1.msra.mxu0 %v34
  %1170 = vmatprep.subr.mxu0 0.0
  %1171 = vmatpush1.msra.mxu0 %v35
  %1172 = vmatprep.subr.mxu0 0.0
  %1173 = vmatpush1.msra.mxu0 0.0
  %1174 = vmatprep.subr.mxu0 0.0
  %1175 = vmatpush1.msra.mxu0 0.0
  %1176 = vmatprep.subr.mxu0 0.0
  %1177 = vmatpush1.msra.mxu0 0.0
  %1178 = vmatprep.subr.mxu0 0.0
  %1179 = vmatpush1.msra.mxu0 0.0
  %1180 = vmatprep.subr.mxu0 0.0
  %1181 = vmatpush1.msra.mxu0 0.0
  %1182 = vmatprep.subr.mxu0 0.0
  %1183 = vmatpush1.msra.mxu0 0.0
  %1184 = vmatprep.subr.mxu0 0.0
  %1185 = vmatpush1.msra.mxu0 0.0
  %1186 = vmatprep.subr.mxu0 0.0
  %1187 = vmatpush1.msra.mxu0 0.0
  %1188 = vmatprep.subr.mxu0 0.0
  %1189 = vmatpush1.msra.mxu0 0.0
  %1190 = vmatprep.subr.mxu0 0.0
  %1191 = vmatpush1.msra.mxu0 0.0
  %1192 = vmatprep.subr.mxu0 0.0
  %1193 = vmatpush1.msra.mxu0 0.0
  %1194 = vmatprep.subr.mxu0 0.0
  %1195 = vmatpush1.msra.mxu0 0.0
  %1196 = vmatprep.subr.mxu0 0.0
  %1197 = vmatpush1.msra.mxu0 0.0
  %1198 = vmatprep.subr.mxu0 0.0
  %1199 = vmatpush1.msra.mxu0 0.0
  %1200 = vmatprep.subr.mxu0 0.0
  %1201 = vmatpush1.msra.mxu0 0.0
  %1202 = vmatprep.subr.mxu0 0.0
  %1203 = vmatpush1.msra.mxu0 0.0
  %1204 = vmatprep.subr.mxu0 0.0
  %1205 = vmatpush1.msra.mxu0 0.0
  %1206 = vmatprep.subr.mxu0 0.0
  %1207 = vmatpush1.msra.mxu0 0.0
  %1208 = vmatprep.subr.mxu0 0.0
  %1209 = vmatpush1.msra.mxu0 0.0
  %1210 = vmatprep.subr.mxu0 0.0
  %1211 = vmatpush1.msra.mxu0 0.0
  %1212 = vmatprep.subr.mxu0 0.0
  %1213 = vmatpush1.msra.mxu0 0.0
  %1214 = vmatprep.subr.mxu0 0.0
  %1215 = vmatpush1.msra.mxu0 0.0
  %1216 = vmatprep.subr.mxu0 0.0
  %1217 = vmatpush1.msra.mxu0 0.0
  %1218 = vmatprep.subr.mxu0 0.0
  %1219 = vmatpush1.msra.mxu0 0.0
  %1220 = vmatprep.subr.mxu0 0.0
  %1221 = vmatpush1.msra.mxu0 0.0
  %1222 = vmatprep.subr.mxu0 0.0
  %1223 = vmatpush1.msra.mxu0 0.0
  %1224 = vmatprep.subr.mxu0 0.0
  %1225 = vmatpush1.msra.mxu0 0.0
  %1226 = vmatprep.subr.mxu0 0.0
  %1227 = vmatpush1.msra.mxu0 0.0
  %1228 = vmatprep.mubr.f32.mxu0 0.0
  %1229 = vmatmul.mubr.f32.gmra.mrb[0].mxu0 %v1162
  %v1230 = vpop.f32.mrb[0].mxu0
  %v1231 = vadd.f32 %v42, %v1230
  %v1232 = vpop.f32.mrb[0].mxu0
  %1233 = vdwg.mxu0
  %v1234 = vtanh.pop %v1231
  %v1235 = vxor.u32 %v1231, 2147483648
  %v1236 = vmul.f32 %v1235, 1.442695
  %v1237 = vpow.pop %v1236
  %v1238 = vadd.f32 %v1237, 1.0
  %v1239 = vrcp.pop %v1238
  %v1240 = vmul.f32 1.0, %v1239
  %v1241 = vsel %vm194, %v1234, %v1240
  %v1242 = vmul.f32 %v1241, %v1037
  %1244 = vrot.lane.b32.xlu0 %v1241, 96
  %v1245 = vpop.permute.xlu0 %1244
  %v1247 = vmul.f32 %v1241, %v1245
  %1249 = vrot.lane.b32.xlu0 %v1247, 16
  %v1250 = vpop.permute.xlu0 %1249
  %v1252 = vadd.f32 %v1242, %v1250
  %v1253 = vtanh.pop %v1252
  %1255 = vrot.lane.b32.xlu0 %v1253, 32
  %v1256 = vpop.permute.xlu0 %1255
  %v1258 = vmul.f32 %v1241, %v1256
  %v1259 = vlaneseq
  %v1260 = vshrl.u32 %v1259, 7
  %v1261 = vsub.s32 4, %v1260
  %v1262 = vrot.slane %v36, %v1261
  %1264 = vrot.lane.b32.xlu0 %v1262, 48
  %v1265 = vpop.permute.xlu0 %1264
  %v1267 = vmul.f32 %v1258, %v1265
  %v1268 = vadd.f32 %v1053, %v1267
  %v1269 = vsel %vm195, %v1154, 0
  %1271 = vmatprep.subr.mxu0 0.0
  %1272 = vmatpush1.msra.mxu0 %v30
  %1273 = vmatprep.subr.mxu0 0.0
  %1274 = vmatpush1.msra.mxu0 %v31
  %1275 = vmatprep.subr.mxu0 0.0
  %1276 = vmatpush1.msra.mxu0 0.0
  %1277 = vmatprep.subr.mxu0 0.0
  %1278 = vmatpush1.msra.mxu0 0.0
  %1279 = vmatprep.subr.mxu0 0.0
  %1280 = vmatpush1.msra.mxu0 0.0
  %1281 = vmatprep.subr.mxu0 0.0
  %1282 = vmatpush1.msra.mxu0 0.0
  %1283 = vmatprep.subr.mxu0 0.0
  %1284 = vmatpush1.msra.mxu0 0.0
  %1285 = vmatprep.subr.mxu0 0.0
  %1286 = vmatpush1.msra.mxu0 0.0
  %1287 = vmatprep.subr.mxu0 0.0
  %1288 = vmatpush1.msra.mxu0 0.0
  %1289 = vmatprep.subr.mxu0 0.0
  %1290 = vmatpush1.msra.mxu0 0.0
  %1291 = vmatprep.subr.mxu0 0.0
  %1292 = vmatpush1.msra.mxu0 0.0
  %1293 = vmatprep.subr.mxu0 0.0
  %1294 = vmatpush1.msra.mxu0 0.0
  %1295 = vmatprep.subr.mxu0 0.0
  %1296 = vmatpush1.msra.mxu0 0.0
  %1297 = vmatprep.subr.mxu0 0.0
  %1298 = vmatpush1.msra.mxu0 0.0
  %1299 = vmatprep.subr.mxu0 0.0
  %1300 = vmatpush1.msra.mxu0 0.0
  %1301 = vmatprep.subr.mxu0 0.0
  %1302 = vmatpush1.msra.mxu0 0.0
  %1303 = vmatprep.subr.mxu0 0.0
  %1304 = vmatpush1.msra.mxu0 0.0
  %1305 = vmatprep.subr.mxu0 0.0
  %1306 = vmatpush1.msra.mxu0 0.0
  %1307 = vmatprep.subr.mxu0 0.0
  %1308 = vmatpush1.msra.mxu0 0.0
  %1309 = vmatprep.subr.mxu0 0.0
  %1310 = vmatpush1.msra.mxu0 0.0
  %1311 = vmatprep.subr.mxu0 0.0
  %1312 = vmatpush1.msra.mxu0 0.0
  %1313 = vmatprep.subr.mxu0 0.0
  %1314 = vmatpush1.msra.mxu0 0.0
  %1315 = vmatprep.subr.mxu0 0.0
  %1316 = vmatpush1.msra.mxu0 0.0
  %1317 = vmatprep.subr.mxu0 0.0
  %1318 = vmatpush1.msra.mxu0 0.0
  %1319 = vmatprep.subr.mxu0 0.0
  %1320 = vmatpush1.msra.mxu0 0.0
  %1321 = vmatprep.subr.mxu0 0.0
  %1322 = vmatpush1.msra.mxu0 0.0
  %1323 = vmatprep.subr.mxu0 0.0
  %1324 = vmatpush1.msra.mxu0 0.0
  %1325 = vmatprep.subr.mxu0 0.0
  %1326 = vmatpush1.msra.mxu0 0.0
  %1327 = vmatprep.subr.mxu0 0.0
  %1328 = vmatpush1.msra.mxu0 0.0
  %1329 = vmatprep.subr.mxu0 0.0
  %1330 = vmatpush1.msra.mxu0 0.0
  %1331 = vmatprep.subr.mxu0 0.0
  %1332 = vmatpush1.msra.mxu0 0.0
  %1333 = vmatprep.subr.mxu0 0.0
  %1334 = vmatpush1.msra.mxu0 0.0
  %1335 = vmatprep.mubr.f32.mxu0 0.0
  %1336 = vmatmul.mubr.f32.gmra.mrb[0].mxu0 %v1269
  %v1337 = vpop.f32.mrb[0].mxu0
  %v1338 = vadd.f32 0.0, %v1337
  %v1339 = vpop.f32.mrb[0].mxu0
  %1340 = vdwg.mxu0
  %v1341 = vadd.f32 %v177, %v1338
  %v1342 = vtanh.pop %v1341
  %v1343 = vxor.u32 %v1341, 2147483648
  %v1344 = vmul.f32 %v1343, 1.442695
  %v1345 = vpow.pop %v1344
  %v1346 = vadd.f32 %v1345, 1.0
  %v1347 = vrcp.pop %v1346
  %v1348 = vmul.f32 1.0, %v1347
  %v1349 = vsel %vm194, %v1342, %v1348
  %v1350 = vmul.f32 %v1349, %v1145
  %1352 = vrot.lane.b32.xlu0 %v1349, 96
  %v1353 = vpop.permute.xlu0 %1352
  %v1355 = vmul.f32 %v1349, %v1353
  %1357 = vrot.lane.b32.xlu0 %v1355, 16
  %v1358 = vpop.permute.xlu0 %1357
  %v1360 = vadd.f32 %v1350, %v1358
  %v1361 = vtanh.pop %v1360
  %1363 = vrot.lane.b32.xlu0 %v1361, 32
  %v1364 = vpop.permute.xlu0 %1363
  %v1366 = vmul.f32 %v1349, %v1364
  %1368 = vrot.lane.b32.xlu0 %v1366, 80
  %v1369 = vpop.permute.xlu0 %1368
  %1372 = vrot.lane.b32.xlu0 %v1258, 96
  %v1373 = vpop.permute.xlu0 %1372
  %v1375 = vsel %vm195, %v1369, %v1373
  %v1377 = vsel %vm300, %v1375, 0
  %1379 = vmatprep.subr.mxu0 0.0
  %1380 = vmatpush1.msra.mxu0 %v32
  %1381 = vmatprep.subr.mxu0 0.0
  %1382 = vmatpush1.msra.mxu0 %v33
  %1383 = vmatprep.subr.mxu0 0.0
  %1384 = vmatpush1.msra.mxu0 %v34
  %1385 = vmatprep.subr.mxu0 0.0
  %1386 = vmatpush1.msra.mxu0 %v35
  %1387 = vmatprep.subr.mxu0 0.0
  %1388 = vmatpush1.msra.mxu0 0.0
  %1389 = vmatprep.subr.mxu0 0.0
  %1390 = vmatpush1.msra.mxu0 0.0
  %1391 = vmatprep.subr.mxu0 0.0
  %1392 = vmatpush1.msra.mxu0 0.0
  %1393 = vmatprep.subr.mxu0 0.0
  %1394 = vmatpush1.msra.mxu0 0.0
  %1395 = vmatprep.subr.mxu0 0.0
  %1396 = vmatpush1.msra.mxu0 0.0
  %1397 = vmatprep.subr.mxu0 0.0
  %1398 = vmatpush1.msra.mxu0 0.0
  %1399 = vmatprep.subr.mxu0 0.0
  %1400 = vmatpush1.msra.mxu0 0.0
  %1401 = vmatprep.subr.mxu0 0.0
  %1402 = vmatpush1.msra.mxu0 0.0
  %1403 = vmatprep.subr.mxu0 0.0
  %1404 = vmatpush1.msra.mxu0 0.0
  %1405 = vmatprep.subr.mxu0 0.0
  %1406 = vmatpush1.msra.mxu0 0.0
  %1407 = vmatprep.subr.mxu0 0.0
  %1408 = vmatpush1.msra.mxu0 0.0
  %1409 = vmatprep.subr.mxu0 0.0
  %1410 = vmatpush1.msra.mxu0 0.0
  %1411 = vmatprep.subr.mxu0 0.0
  %1412 = vmatpush1.msra.mxu0 0.0
  %1413 = vmatprep.subr.mxu0 0.0
  %1414 = vmatpush1.msra.mxu0 0.0
  %1415 = vmatprep.subr.mxu0 0.0
  %1416 = vmatpush1.msra.mxu0 0.0
  %1417 = vmatprep.subr.mxu0 0.0
  %1418 = vmatpush1.msra.mxu0 0.0
  %1419 = vmatprep.subr.mxu0 0.0
  %1420 = vmatpush1.msra.mxu0 0.0
  %1421 = vmatprep.subr.mxu0 0.0
  %1422 = vmatpush1.msra.mxu0 0.0
  %1423 = vmatprep.subr.mxu0 0.0
  %1424 = vmatpush1.msra.mxu0 0.0
  %1425 = vmatprep.subr.mxu0 0.0
  %1426 = vmatpush1.msra.mxu0 0.0
  %1427 = vmatprep.subr.mxu0 0.0
  %1428 = vmatpush1.msra.mxu0 0.0
  %1429 = vmatprep.subr.mxu0 0.0
  %1430 = vmatpush1.msra.mxu0 0.0
  %1431 = vmatprep.subr.mxu0 0.0
  %1432 = vmatpush1.msra.mxu0 0.0
  %1433 = vmatprep.subr.mxu0 0.0
  %1434 = vmatpush1.msra.mxu0 0.0
  %1435 = vmatprep.subr.mxu0 0.0
  %1436 = vmatpush1.msra.mxu0 0.0
  %1437 = vmatprep.subr.mxu0 0.0
  %1438 = vmatpush1.msra.mxu0 0.0
  %1439 = vmatprep.subr.mxu0 0.0
  %1440 = vmatpush1.msra.mxu0 0.0
  %1441 = vmatprep.subr.mxu0 0.0
  %1442 = vmatpush1.msra.mxu0 0.0
  %1443 = vmatprep.mubr.f32.mxu0 0.0
  %1444 = vmatmul.mubr.f32.gmra.mrb[0].mxu0 %v1377
  %v1445 = vpop.f32.mrb[0].mxu0
  %v1446 = vadd.f32 %v42, %v1445
  %v1447 = vpop.f32.mrb[0].mxu0
  %1448 = vdwg.mxu0
  %v1449 = vtanh.pop %v1446
  %v1450 = vxor.u32 %v1446, 2147483648
  %v1451 = vmul.f32 %v1450, 1.442695
  %v1452 = vpow.pop %v1451
  %v1453 = vadd.f32 %v1452, 1.0
  %v1454 = vrcp.pop %v1453
  %v1455 = vmul.f32 1.0, %v1454
  %v1456 = vsel %vm194, %v1449, %v1455
  %v1457 = vmul.f32 %v1456, %v1252
  %1459 = vrot.lane.b32.xlu0 %v1456, 96
  %v1460 = vpop.permute.xlu0 %1459
  %v1462 = vmul.f32 %v1456, %v1460
  %1464 = vrot.lane.b32.xlu0 %v1462, 16
  %v1465 = vpop.permute.xlu0 %1464
  %v1467 = vadd.f32 %v1457, %v1465
  %v1468 = vtanh.pop %v1467
  %1470 = vrot.lane.b32.xlu0 %v1468, 32
  %v1471 = vpop.permute.xlu0 %1470
  %v1473 = vmul.f32 %v1456, %v1471
  %v1474 = vlaneseq
  %v1475 = vshrl.u32 %v1474, 7
  %v1476 = vsub.s32 5, %v1475
  %v1477 = vrot.slane %v36, %v1476
  %1479 = vrot.lane.b32.xlu0 %v1477, 48
  %v1480 = vpop.permute.xlu0 %1479
  %v1482 = vmul.f32 %v1473, %v1480
  %v1483 = vadd.f32 %v1268, %v1482
  %v1484 = vsel %vm195, %v1369, 0
  %1486 = vmatprep.subr.mxu0 0.0
  %1487 = vmatpush1.msra.mxu0 %v30
  %1488 = vmatprep.subr.mxu0 0.0
  %1489 = vmatpush1.msra.mxu0 %v31
  %1490 = vmatprep.subr.mxu0 0.0
  %1491 = vmatpush1.msra.mxu0 0.0
  %1492 = vmatprep.subr.mxu0 0.0
  %1493 = vmatpush1.msra.mxu0 0.0
  %1494 = vmatprep.subr.mxu0 0.0
  %1495 = vmatpush1.msra.mxu0 0.0
  %1496 = vmatprep.subr.mxu0 0.0
  %1497 = vmatpush1.msra.mxu0 0.0
  %1498 = vmatprep.subr.mxu0 0.0
  %1499 = vmatpush1.msra.mxu0 0.0
  %1500 = vmatprep.subr.mxu0 0.0
  %1501 = vmatpush1.msra.mxu0 0.0
  %1502 = vmatprep.subr.mxu0 0.0
  %1503 = vmatpush1.msra.mxu0 0.0
  %1504 = vmatprep.subr.mxu0 0.0
  %1505 = vmatpush1.msra.mxu0 0.0
  %1506 = vmatprep.subr.mxu0 0.0
  %1507 = vmatpush1.msra.mxu0 0.0
  %1508 = vmatprep.subr.mxu0 0.0
  %1509 = vmatpush1.msra.mxu0 0.0
  %1510 = vmatprep.subr.mxu0 0.0
  %1511 = vmatpush1.msra.mxu0 0.0
  %1512 = vmatprep.subr.mxu0 0.0
  %1513 = vmatpush1.msra.mxu0 0.0
  %1514 = vmatprep.subr.mxu0 0.0
  %1515 = vmatpush1.msra.mxu0 0.0
  %1516 = vmatprep.subr.mxu0 0.0
  %1517 = vmatpush1.msra.mxu0 0.0
  %1518 = vmatprep.subr.mxu0 0.0
  %1519 = vmatpush1.msra.mxu0 0.0
  %1520 = vmatprep.subr.mxu0 0.0
  %1521 = vmatpush1.msra.mxu0 0.0
  %1522 = vmatprep.subr.mxu0 0.0
  %1523 = vmatpush1.msra.mxu0 0.0
  %1524 = vmatprep.subr.mxu0 0.0
  %1525 = vmatpush1.msra.mxu0 0.0
  %1526 = vmatprep.subr.mxu0 0.0
  %1527 = vmatpush1.msra.mxu0 0.0
  %1528 = vmatprep.subr.mxu0 0.0
  %1529 = vmatpush1.msra.mxu0 0.0
  %1530 = vmatprep.subr.mxu0 0.0
  %1531 = vmatpush1.msra.mxu0 0.0
  %1532 = vmatprep.subr.mxu0 0.0
  %1533 = vmatpush1.msra.mxu0 0.0
  %1534 = vmatprep.subr.mxu0 0.0
  %1535 = vmatpush1.msra.mxu0 0.0
  %1536 = vmatprep.subr.mxu0 0.0
  %1537 = vmatpush1.msra.mxu0 0.0
  %1538 = vmatprep.subr.mxu0 0.0
  %1539 = vmatpush1.msra.mxu0 0.0
  %1540 = vmatprep.subr.mxu0 0.0
  %1541 = vmatpush1.msra.mxu0 0.0
  %1542 = vmatprep.subr.mxu0 0.0
  %1543 = vmatpush1.msra.mxu0 0.0
  %1544 = vmatprep.subr.mxu0 0.0
  %1545 = vmatpush1.msra.mxu0 0.0
  %1546 = vmatprep.subr.mxu0 0.0
  %1547 = vmatpush1.msra.mxu0 0.0
  %1548 = vmatprep.subr.mxu0 0.0
  %1549 = vmatpush1.msra.mxu0 0.0
  %1550 = vmatprep.mubr.f32.mxu0 0.0
  %1551 = vmatmul.mubr.f32.gmra.mrb[0].mxu0 %v1484
  %v1552 = vpop.f32.mrb[0].mxu0
  %v1553 = vadd.f32 0.0, %v1552
  %v1554 = vpop.f32.mrb[0].mxu0
  %1555 = vdwg.mxu0
  %v1556 = vadd.f32 %v182, %v1553
  %v1557 = vtanh.pop %v1556
  %v1558 = vxor.u32 %v1556, 2147483648
  %v1559 = vmul.f32 %v1558, 1.442695
  %v1560 = vpow.pop %v1559
  %v1561 = vadd.f32 %v1560, 1.0
  %v1562 = vrcp.pop %v1561
  %v1563 = vmul.f32 1.0, %v1562
  %v1564 = vsel %vm194, %v1557, %v1563
  %v1565 = vmul.f32 %v1564, %v1360
  %1567 = vrot.lane.b32.xlu0 %v1564, 96
  %v1568 = vpop.permute.xlu0 %1567
  %v1570 = vmul.f32 %v1564, %v1568
  %1572 = vrot.lane.b32.xlu0 %v1570, 16
  %v1573 = vpop.permute.xlu0 %1572
  %v1575 = vadd.f32 %v1565, %v1573
  %v1576 = vtanh.pop %v1575
  %1578 = vrot.lane.b32.xlu0 %v1576, 32
  %v1579 = vpop.permute.xlu0 %1578
  %v1581 = vmul.f32 %v1564, %v1579
  %1583 = vrot.lane.b32.xlu0 %v1581, 80
  %v1584 = vpop.permute.xlu0 %1583
  %1587 = vrot.lane.b32.xlu0 %v1473, 96
  %v1588 = vpop.permute.xlu0 %1587
  %v1590 = vsel %vm195, %v1584, %v1588
  %v1592 = vsel %vm300, %v1590, 0
  %1594 = vmatprep.subr.mxu0 0.0
  %1595 = vmatpush1.msra.mxu0 %v32
  %1596 = vmatprep.subr.mxu0 0.0
  %1597 = vmatpush1.msra.mxu0 %v33
  %1598 = vmatprep.subr.mxu0 0.0
  %1599 = vmatpush1.msra.mxu0 %v34
  %1600 = vmatprep.subr.mxu0 0.0
  %1601 = vmatpush1.msra.mxu0 %v35
  %1602 = vmatprep.subr.mxu0 0.0
  %1603 = vmatpush1.msra.mxu0 0.0
  %1604 = vmatprep.subr.mxu0 0.0
  %1605 = vmatpush1.msra.mxu0 0.0
  %1606 = vmatprep.subr.mxu0 0.0
  %1607 = vmatpush1.msra.mxu0 0.0
  %1608 = vmatprep.subr.mxu0 0.0
  %1609 = vmatpush1.msra.mxu0 0.0
  %1610 = vmatprep.subr.mxu0 0.0
  %1611 = vmatpush1.msra.mxu0 0.0
  %1612 = vmatprep.subr.mxu0 0.0
  %1613 = vmatpush1.msra.mxu0 0.0
  %1614 = vmatprep.subr.mxu0 0.0
  %1615 = vmatpush1.msra.mxu0 0.0
  %1616 = vmatprep.subr.mxu0 0.0
  %1617 = vmatpush1.msra.mxu0 0.0
  %1618 = vmatprep.subr.mxu0 0.0
  %1619 = vmatpush1.msra.mxu0 0.0
  %1620 = vmatprep.subr.mxu0 0.0
  %1621 = vmatpush1.msra.mxu0 0.0
  %1622 = vmatprep.subr.mxu0 0.0
  %1623 = vmatpush1.msra.mxu0 0.0
  %1624 = vmatprep.subr.mxu0 0.0
  %1625 = vmatpush1.msra.mxu0 0.0
  %1626 = vmatprep.subr.mxu0 0.0
  %1627 = vmatpush1.msra.mxu0 0.0
  %1628 = vmatprep.subr.mxu0 0.0
  %1629 = vmatpush1.msra.mxu0 0.0
  %1630 = vmatprep.subr.mxu0 0.0
  %1631 = vmatpush1.msra.mxu0 0.0
  %1632 = vmatprep.subr.mxu0 0.0
  %1633 = vmatpush1.msra.mxu0 0.0
  %1634 = vmatprep.subr.mxu0 0.0
  %1635 = vmatpush1.msra.mxu0 0.0
  %1636 = vmatprep.subr.mxu0 0.0
  %1637 = vmatpush1.msra.mxu0 0.0
  %1638 = vmatprep.subr.mxu0 0.0
  %1639 = vmatpush1.msra.mxu0 0.0
  %1640 = vmatprep.subr.mxu0 0.0
  %1641 = vmatpush1.msra.mxu0 0.0
  %1642 = vmatprep.subr.mxu0 0.0
  %1643 = vmatpush1.msra.mxu0 0.0
  %1644 = vmatprep.subr.mxu0 0.0
  %1645 = vmatpush1.msra.mxu0 0.0
  %1646 = vmatprep.subr.mxu0 0.0
  %1647 = vmatpush1.msra.mxu0 0.0
  %1648 = vmatprep.subr.mxu0 0.0
  %1649 = vmatpush1.msra.mxu0 0.0
  %1650 = vmatprep.subr.mxu0 0.0
  %1651 = vmatpush1.msra.mxu0 0.0
  %1652 = vmatprep.subr.mxu0 0.0
  %1653 = vmatpush1.msra.mxu0 0.0
  %1654 = vmatprep.subr.mxu0 0.0
  %1655 = vmatpush1.msra.mxu0 0.0
  %1656 = vmatprep.subr.mxu0 0.0
  %1657 = vmatpush1.msra.mxu0 0.0
  %1658 = vmatprep.mubr.f32.mxu0 0.0
  %1659 = vmatmul.mubr.f32.gmra.mrb[0].mxu0 %v1592
  %v1660 = vpop.f32.mrb[0].mxu0
  %v1661 = vadd.f32 %v42, %v1660
  %v1662 = vpop.f32.mrb[0].mxu0
  %1663 = vdwg.mxu0
  %v1664 = vtanh.pop %v1661
  %v1665 = vxor.u32 %v1661, 2147483648
  %v1666 = vmul.f32 %v1665, 1.442695
  %v1667 = vpow.pop %v1666
  %v1668 = vadd.f32 %v1667, 1.0
  %v1669 = vrcp.pop %v1668
  %v1670 = vmul.f32 1.0, %v1669
  %v1671 = vsel %vm194, %v1664, %v1670
  %v1672 = vmul.f32 %v1671, %v1467
  %1674 = vrot.lane.b32.xlu0 %v1671, 96
  %v1675 = vpop.permute.xlu0 %1674
  %v1677 = vmul.f32 %v1671, %v1675
  %1679 = vrot.lane.b32.xlu0 %v1677, 16
  %v1680 = vpop.permute.xlu0 %1679
  %v1682 = vadd.f32 %v1672, %v1680
  %v1683 = vtanh.pop %v1682
  %1685 = vrot.lane.b32.xlu0 %v1683, 32
  %v1686 = vpop.permute.xlu0 %1685
  %v1688 = vmul.f32 %v1671, %v1686
  %v1689 = vlaneseq
  %v1690 = vshrl.u32 %v1689, 7
  %v1691 = vsub.s32 6, %v1690
  %v1692 = vrot.slane %v36, %v1691
  %1694 = vrot.lane.b32.xlu0 %v1692, 48
  %v1695 = vpop.permute.xlu0 %1694
  %v1697 = vmul.f32 %v1688, %v1695
  %v1698 = vadd.f32 %v1483, %v1697
  %v1699 = vsel %vm195, %v1584, 0
  %1701 = vmatprep.subr.mxu0 0.0
  %1702 = vmatpush1.msra.mxu0 %v30
  %1703 = vmatprep.subr.mxu0 0.0
  %1704 = vmatpush1.msra.mxu0 %v31
  %1705 = vmatprep.subr.mxu0 0.0
  %1706 = vmatpush1.msra.mxu0 0.0
  %1707 = vmatprep.subr.mxu0 0.0
  %1708 = vmatpush1.msra.mxu0 0.0
  %1709 = vmatprep.subr.mxu0 0.0
  %1710 = vmatpush1.msra.mxu0 0.0
  %1711 = vmatprep.subr.mxu0 0.0
  %1712 = vmatpush1.msra.mxu0 0.0
  %1713 = vmatprep.subr.mxu0 0.0
  %1714 = vmatpush1.msra.mxu0 0.0
  %1715 = vmatprep.subr.mxu0 0.0
  %1716 = vmatpush1.msra.mxu0 0.0
  %1717 = vmatprep.subr.mxu0 0.0
  %1718 = vmatpush1.msra.mxu0 0.0
  %1719 = vmatprep.subr.mxu0 0.0
  %1720 = vmatpush1.msra.mxu0 0.0
  %1721 = vmatprep.subr.mxu0 0.0
  %1722 = vmatpush1.msra.mxu0 0.0
  %1723 = vmatprep.subr.mxu0 0.0
  %1724 = vmatpush1.msra.mxu0 0.0
  %1725 = vmatprep.subr.mxu0 0.0
  %1726 = vmatpush1.msra.mxu0 0.0
  %1727 = vmatprep.subr.mxu0 0.0
  %1728 = vmatpush1.msra.mxu0 0.0
  %1729 = vmatprep.subr.mxu0 0.0
  %1730 = vmatpush1.msra.mxu0 0.0
  %1731 = vmatprep.subr.mxu0 0.0
  %1732 = vmatpush1.msra.mxu0 0.0
  %1733 = vmatprep.subr.mxu0 0.0
  %1734 = vmatpush1.msra.mxu0 0.0
  %1735 = vmatprep.subr.mxu0 0.0
  %1736 = vmatpush1.msra.mxu0 0.0
  %1737 = vmatprep.subr.mxu0 0.0
  %1738 = vmatpush1.msra.mxu0 0.0
  %1739 = vmatprep.subr.mxu0 0.0
  %1740 = vmatpush1.msra.mxu0 0.0
  %1741 = vmatprep.subr.mxu0 0.0
  %1742 = vmatpush1.msra.mxu0 0.0
  %1743 = vmatprep.subr.mxu0 0.0
  %1744 = vmatpush1.msra.mxu0 0.0
  %1745 = vmatprep.subr.mxu0 0.0
  %1746 = vmatpush1.msra.mxu0 0.0
  %1747 = vmatprep.subr.mxu0 0.0
  %1748 = vmatpush1.msra.mxu0 0.0
  %1749 = vmatprep.subr.mxu0 0.0
  %1750 = vmatpush1.msra.mxu0 0.0
  %1751 = vmatprep.subr.mxu0 0.0
  %1752 = vmatpush1.msra.mxu0 0.0
  %1753 = vmatprep.subr.mxu0 0.0
  %1754 = vmatpush1.msra.mxu0 0.0
  %1755 = vmatprep.subr.mxu0 0.0
  %1756 = vmatpush1.msra.mxu0 0.0
  %1757 = vmatprep.subr.mxu0 0.0
  %1758 = vmatpush1.msra.mxu0 0.0
  %1759 = vmatprep.subr.mxu0 0.0
  %1760 = vmatpush1.msra.mxu0 0.0
  %1761 = vmatprep.subr.mxu0 0.0
  %1762 = vmatpush1.msra.mxu0 0.0
  %1763 = vmatprep.subr.mxu0 0.0
  %1764 = vmatpush1.msra.mxu0 0.0
  %1765 = vmatprep.mubr.f32.mxu0 0.0
  %1766 = vmatmul.mubr.f32.gmra.mrb[0].mxu0 %v1699
  %v1767 = vpop.f32.mrb[0].mxu0
  %v1768 = vadd.f32 0.0, %v1767
  %v1769 = vpop.f32.mrb[0].mxu0
  %1770 = vdwg.mxu0
  %v1771 = vadd.f32 %v187, %v1768
  %v1772 = vtanh.pop %v1771
  %v1773 = vxor.u32 %v1771, 2147483648
  %v1774 = vmul.f32 %v1773, 1.442695
  %v1775 = vpow.pop %v1774
  %v1776 = vadd.f32 %v1775, 1.0
  %v1777 = vrcp.pop %v1776
  %v1778 = vmul.f32 1.0, %v1777
  %v1779 = vsel %vm194, %v1772, %v1778
  %v1780 = vmul.f32 %v1779, %v1575
  %1782 = vrot.lane.b32.xlu0 %v1779, 96
  %v1783 = vpop.permute.xlu0 %1782
  %v1785 = vmul.f32 %v1779, %v1783
  %1787 = vrot.lane.b32.xlu0 %v1785, 16
  %v1788 = vpop.permute.xlu0 %1787
  %v1790 = vadd.f32 %v1780, %v1788
  %v1791 = vtanh.pop %v1790
  %1793 = vrot.lane.b32.xlu0 %v1791, 32
  %v1794 = vpop.permute.xlu0 %1793
  %v1796 = vmul.f32 %v1779, %v1794
  %1798 = vrot.lane.b32.xlu0 %v1796, 80
  %v1799 = vpop.permute.xlu0 %1798
  %1802 = vrot.lane.b32.xlu0 %v1688, 96
  %v1803 = vpop.permute.xlu0 %1802
  %v1805 = vsel %vm195, %v1799, %v1803
  %v1807 = vsel %vm300, %v1805, 0
  %1809 = vmatprep.subr.mxu0 0.0
  %1810 = vmatpush1.msra.mxu0 %v32
  %1811 = vmatprep.subr.mxu0 0.0
  %1812 = vmatpush1.msra.mxu0 %v33
  %1813 = vmatprep.subr.mxu0 0.0
  %1814 = vmatpush1.msra.mxu0 %v34
  %1815 = vmatprep.subr.mxu0 0.0
  %1816 = vmatpush1.msra.mxu0 %v35
  %1817 = vmatprep.subr.mxu0 0.0
  %1818 = vmatpush1.msra.mxu0 0.0
  %1819 = vmatprep.subr.mxu0 0.0
  %1820 = vmatpush1.msra.mxu0 0.0
  %1821 = vmatprep.subr.mxu0 0.0
  %1822 = vmatpush1.msra.mxu0 0.0
  %1823 = vmatprep.subr.mxu0 0.0
  %1824 = vmatpush1.msra.mxu0 0.0
  %1825 = vmatprep.subr.mxu0 0.0
  %1826 = vmatpush1.msra.mxu0 0.0
  %1827 = vmatprep.subr.mxu0 0.0
  %1828 = vmatpush1.msra.mxu0 0.0
  %1829 = vmatprep.subr.mxu0 0.0
  %1830 = vmatpush1.msra.mxu0 0.0
  %1831 = vmatprep.subr.mxu0 0.0
  %1832 = vmatpush1.msra.mxu0 0.0
  %1833 = vmatprep.subr.mxu0 0.0
  %1834 = vmatpush1.msra.mxu0 0.0
  %1835 = vmatprep.subr.mxu0 0.0
  %1836 = vmatpush1.msra.mxu0 0.0
  %1837 = vmatprep.subr.mxu0 0.0
  %1838 = vmatpush1.msra.mxu0 0.0
  %1839 = vmatprep.subr.mxu0 0.0
  %1840 = vmatpush1.msra.mxu0 0.0
  %1841 = vmatprep.subr.mxu0 0.0
  %1842 = vmatpush1.msra.mxu0 0.0
  %1843 = vmatprep.subr.mxu0 0.0
  %1844 = vmatpush1.msra.mxu0 0.0
  %1845 = vmatprep.subr.mxu0 0.0
  %1846 = vmatpush1.msra.mxu0 0.0
  %1847 = vmatprep.subr.mxu0 0.0
  %1848 = vmatpush1.msra.mxu0 0.0
  %1849 = vmatprep.subr.mxu0 0.0
  %1850 = vmatpush1.msra.mxu0 0.0
  %1851 = vmatprep.subr.mxu0 0.0
  %1852 = vmatpush1.msra.mxu0 0.0
  %1853 = vmatprep.subr.mxu0 0.0
  %1854 = vmatpush1.msra.mxu0 0.0
  %1855 = vmatprep.subr.mxu0 0.0
  %1856 = vmatpush1.msra.mxu0 0.0
  %1857 = vmatprep.subr.mxu0 0.0
  %1858 = vmatpush1.msra.mxu0 0.0
  %1859 = vmatprep.subr.mxu0 0.0
  %1860 = vmatpush1.msra.mxu0 0.0
  %1861 = vmatprep.subr.mxu0 0.0
  %1862 = vmatpush1.msra.mxu0 0.0
  %1863 = vmatprep.subr.mxu0 0.0
  %1864 = vmatpush1.msra.mxu0 0.0
  %1865 = vmatprep.subr.mxu0 0.0
  %1866 = vmatpush1.msra.mxu0 0.0
  %1867 = vmatprep.subr.mxu0 0.0
  %1868 = vmatpush1.msra.mxu0 0.0
  %1869 = vmatprep.subr.mxu0 0.0
  %1870 = vmatpush1.msra.mxu0 0.0
  %1871 = vmatprep.subr.mxu0 0.0
  %1872 = vmatpush1.msra.mxu0 0.0
  %1873 = vmatprep.mubr.f32.mxu0 0.0
  %1874 = vmatmul.mubr.f32.gmra.mrb[0].mxu0 %v1807
  %v1875 = vpop.f32.mrb[0].mxu0
  %v1876 = vadd.f32 %v42, %v1875
  %v1877 = vpop.f32.mrb[0].mxu0
  %1878 = vdwg.mxu0
  %v1879 = vtanh.pop %v1876
  %v1880 = vxor.u32 %v1876, 2147483648
  %v1881 = vmul.f32 %v1880, 1.442695
  %v1882 = vpow.pop %v1881
  %v1883 = vadd.f32 %v1882, 1.0
  %v1884 = vrcp.pop %v1883
  %v1885 = vmul.f32 1.0, %v1884
  %v1886 = vsel %vm194, %v1879, %v1885
  %v1887 = vmul.f32 %v1886, %v1682
  %1889 = vrot.lane.b32.xlu0 %v1886, 96
  %v1890 = vpop.permute.xlu0 %1889
  %v1892 = vmul.f32 %v1886, %v1890
  %1894 = vrot.lane.b32.xlu0 %v1892, 16
  %v1895 = vpop.permute.xlu0 %1894
  %v1897 = vadd.f32 %v1887, %v1895
  %v1898 = vtanh.pop %v1897
  %1900 = vrot.lane.b32.xlu0 %v1898, 32
  %v1901 = vpop.permute.xlu0 %1900
  %v1903 = vmul.f32 %v1886, %v1901
  %v1904 = vlaneseq
  %v1905 = vshrl.u32 %v1904, 7
  %v1906 = vsub.s32 7, %v1905
  %v1907 = vrot.slane %v36, %v1906
  %1909 = vrot.lane.b32.xlu0 %v1907, 48
  %v1910 = vpop.permute.xlu0 %1909
  %v1912 = vmul.f32 %v1903, %v1910
  %v1913 = vadd.f32 %v1698, %v1912
  %1915 = vrot.lane.b32.xlu0 %v1913, 80
  %v1916 = vpop.permute.xlu0 %1915
  %v1918 = vsel %vm195, %v1916, 0.0
  %1919 = vadd.xlane.f32.xlu0 %v1918
  %v1920 = vpop.xlane.xlu0 %1919
  %s1921 = sld [smem:[#allocation2]]
  %v1922 = vstv %s1921
  %v1923 = vadd.f32 %v1920, %v1922
  %vm1924 = vcmask 7168
  %1925 = vst.msk [vmem:[%s8] sm:$0xff] %vm1924, %v1923
  // Predicated region
  $region34: #{vitalsign_spo2_forward.1} parent=0 // pred_check
    _
  $region35: #{vitalsign_spo2_forward.1} parent=0 // pred_check_branch
    %1927 = sbr.rel (0) target = $region37
  $region36: #{vitalsign_spo2_forward.1} parent=0 // pred_region
    _
  $region37: #{vitalsign_spo2_forward.1} parent=0 // pred_fallthru
    _
  // Predicated region
  $region38: #{vitalsign_spo2_forward.1} parent=0 // pred_check
    _
  $region39: #{vitalsign_spo2_forward.1} parent=0 // pred_check_branch
    %1929 = sbr.rel (0) target = $region41
  $region40: #{vitalsign_spo2_forward.1} parent=0 // pred_region
    _
  $region41: #{vitalsign_spo2_forward.1} parent=0 // pred_fallthru
    _

</llo_original>
